<compile_context>
chip_gen: v6e
topology: v6e:2x2x1
jax: 0.10.0
libtpu: 0.0.40
codegen_flags: <defaults>
</compile_context>

<pallas_src>
import jax
import jax.numpy as jnp
from jax import lax
from jax.experimental import pallas as pl
from jax.experimental.pallas import tpu as pltpu


# ----------------------------- small helpers --------------------------------

def _round_up(x, m):
    return ((x + m - 1) // m) * m


def _cdiv(a, b):
    return -(-a // b)


def _vmem_capacity_bytes():
    """Per-core VMEM capacity; conservative 64 MiB (v7x-sized) default if the
    hardware query is unavailable (e.g. interpret mode)."""
    try:
        return int(pltpu.get_tpu_info().vmem_capacity_bytes)
    except Exception:  # hardware query only -- never hides kernel errors
        return 64 * 1024 * 1024


def _tiling_params():
    """(per-step VMEM budget, scoped vmem limit, min grid steps)."""
    cap = _vmem_capacity_bytes()
    small_vmem = cap <= 64 * 1024 * 1024          # v7x: 64 MiB/TC, 2 TCs
    limit = min(cap * 3 // 4, 96 * 1024 * 1024)   # scoped VMEM requested
    budget = int(limit * 0.85)                    # headroom for Mosaic internals
    min_steps = 8 if small_vmem else 3            # 2 TCs want more grid steps
    return budget, limit, min_steps


def _vmem_estimate(th, wp, cin_p, cout_p):
    """Per-grid-step VMEM working set (bytes): every large buffer the kernel
    touches (pipeline double buffers + scratch + in-kernel temporaries)."""
    inp = 2 * th * (wp + 2) * cin_p * 2           # bf16 input block, 2 buffers
    out = 2 * th * wp * cout_p * 2                # bf16 output block, 2 buffers
    wts = 2 * 3 * (3 * cin_p) * cout_p * 2        # bf16 weights, 2 buffers
    cc = (th + 2) * wp * (3 * cin_p) * 2          # kw-folded window scratch
    carry = 2 * (wp + 2) * cin_p * 2              # 2-row halo carry
    acc = th * wp * cout_p * 4                    # f32 accumulator
    tmp = th * wp * cout_p * (4 + 2)              # BN/ReLU f32 temp + bf16 cast
    return inp + out + wts + cc + carry + acc + tmp + (2 << 20)


def _pick_row_tile(h, n, wp, cin_p, cout_p, budget, min_steps):
    """Row-tile height TH and tile count T.  Largest TH that fits the budget,
    shrunk only as far as needed to keep the pipeline / both v7x cores busy,
    then fitted exactly to ceil((H+2)/T) so wasted padded rows are minimal."""
    rows_needed = h + 2                           # 2 warm-up rows per image
    cands = [c for c in (256, 128, 64, 32, 16, 8) if c <= max(rows_needed, 8)]
    th = cands[-1]
    for c in cands:                               # descending: first fit = largest
        if _vmem_estimate(c, wp, cin_p, cout_p) <= budget:
            th = c
            break
    while th > 8 and n * _cdiv(rows_needed, th) < min_steps:
        th //= 2
    t = _cdiv(rows_needed, th)
    th = max(_cdiv(rows_needed, t), 2)            # exact fit; carry needs TH >= 2
    return th, t


# ----------------------------- JAX glue ops ---------------------------------

def _nearest_interpolate_nchw(x, out_hw):
    """F.interpolate(mode='nearest') on NCHW (PyTorch index rule)."""
    _, _, h_in, w_in = x.shape
    h_out, w_out = out_hw
    hi = (jnp.arange(h_out) * h_in) // h_out
    wi = (jnp.arange(w_out) * w_in) // w_out
    return x[:, :, hi[:, None], wi[None, :]]


def _adaptive_max_pool2d_nchw(x, out_hw):
    """F.adaptive_max_pool2d on NCHW."""
    _, _, h_in, w_in = x.shape
    h_out, w_out = out_hw
    if h_in % h_out == 0 and w_in % w_out == 0:   # common case: plain max pool
        kh, kw = h_in // h_out, w_in // w_out
        return lax.reduce_window(x, -jnp.inf, lax.max,
                                 (1, 1, kh, kw), (1, 1, kh, kw), "VALID")
    # general (non-divisible) PyTorch bins, small static output sizes only
    rows = []
    for i in range(h_out):
        hs = (i * h_in) // h_out
        he = -((-(i + 1) * h_in) // h_out)
        cols = []
        for j in range(w_out):
            ws = (j * w_in) // w_out
            we = -((-(j + 1) * w_in) // w_out)
            cols.append(jnp.max(x[:, :, hs:he, ws:we], axis=(2, 3)))
        rows.append(jnp.stack(cols, axis=-1))
    return jnp.stack(rows, axis=-2)


# ----------------------------- Pallas kernel --------------------------------

def _pconv3x3_bn_relu_kernel(xt_ref, w_ref, scale_ref, shift_ref, o_ref,
                             carry_ref, cc_ref):
    # xt_ref:    (TH, Wp+2, Cin_p)     bf16  padded-input rows [j*TH, (j+1)*TH)
    # w_ref:     (3, 3*Cin_p, Cout_p)  bf16  contraction index = kw*Cin_p + cin
    # scale_ref: (1, Cout_p)           f32   fused BN scale (gamma/sqrt(var+eps))
    # shift_ref: (1, Cout_p)           f32   fused BN shift (beta - mean*scale)
    # o_ref:     (TH, Wp, Cout_p)      bf16  2-row-delayed output rows
    #                                        (row q == real output row q-2)
    # carry_ref: (2, Wp+2, Cin_p)      bf16  last 2 padded-input rows of tile j-1
    # cc_ref:    ((TH+2)*Wp, 3*Cin_p)  bf16  kw-folded conv window (scratch)
    th, wp, cout = o_ref.shape
    cin = xt_ref.shape[-1]
    j = pl.program_id(1)

    @pl.when(j == 0)
    def _():
        # Top of a new image: the halo rows feed only the two discarded
        # warm-up output rows; zero them for determinism.
        carry_ref[...] = jnp.zeros_like(carry_ref)

    # Build the kw-folded window ONCE per tile (no per-kh patch copies):
    #   cc[m*Wp + y, kw*Cin_p + c] = padded input row (j*TH + m - 2),
    #                                padded column (y + kw), channel c.
    # Rows 0..1 come from the carry, rows 2..TH+1 from the current block.
    # All destinations are (16,128)-aligned (Wp % 16 == 0, Cin_p % 128 == 0).
    for kw in range(3):
        cc_ref[0:2 * wp, kw * cin:(kw + 1) * cin] = (
            carry_ref[:, kw:kw + wp, :].reshape(2 * wp, cin))
        cc_ref[2 * wp:, kw * cin:(kw + 1) * cin] = (
            xt_ref[:, kw:kw + wp, :].reshape(th * wp, cin))

    # Carry the last two rows of this block to the next row tile.
    carry_ref[...] = xt_ref[th - 2:th, :, :]

    # 3 MXU matmuls with K = 3*Cin_p; each LHS is an aligned row slice of cc
    # (start = kh*Wp, a multiple of 16) -- no materialised patch copies, and a
    # single sequential f32 accumulation chain (MRB-friendly on v7x).
    acc = jnp.dot(cc_ref[0:th * wp, :], w_ref[0],
                  preferred_element_type=jnp.float32)
    for kh in (1, 2):
        acc = acc + jnp.dot(cc_ref[kh * wp:kh * wp + th * wp, :], w_ref[kh],
                            preferred_element_type=jnp.float32)

    y = jnp.maximum(acc * scale_ref[...] + shift_ref[...], 0.0)   # BN + ReLU, f32
    o_ref[...] = y.reshape(th, wp, cout).astype(o_ref.dtype)      # lane-dense bf16


# ----------------------------- module wrapper --------------------------------

def pconv_module_forward(x_list, params, eps=1e-5):
    assert len(x_list) == 3
    x0, x1, x2 = x_list
    n, c, h, w = x1.shape
    out_size = (h, w)

    # Preprocessing exactly as in the PyTorch forward (plain fused XLA ops).
    x0 = _nearest_interpolate_nchw(x0, out_size)
    x2 = _adaptive_max_pool2d_nchw(x2, out_size)

    cin = 3 * c
    cout = params["conv_weight"].shape[0]
    cin_p = _round_up(cin, 128)                   # lane-dense contraction dim
    cout_p = _round_up(cout, 128)                 # lane-dense output stores
    wp = _round_up(w, 16)                         # bf16 sublane packing

    budget, vmem_limit, min_steps = _tiling_params()
    th, t = _pick_row_tile(h, n, wp, cin_p, cout_p, budget, min_steps)
    rows = t * th                                 # >= h + 2

    # Channel-folded NHWC input (channel index ci*3 + d), bf16, padded:
    #   1 top conv-pad row + bottom zero rows up to `rows`,
    #   1 left conv-pad col + right zero cols up to Wp+2, channels to Cin_p.
    # No overlapping-halo gather in HBM: row tiles are plain blocks.
    stacked = jnp.stack([x0, x1, x2], axis=2)                   # (N, C, 3, H, W)
    x_nhwc = jnp.transpose(stacked, (0, 3, 4, 1, 2)).reshape(n, h, w, cin)
    xp = jnp.pad(x_nhwc.astype(jnp.bfloat16),
                 ((0, 0), (1, rows - h - 1), (1, wp - w + 1), (0, cin_p - cin)))

    # Conv3d weight collapsed to 2-D, kw folded into the contraction dim.
    w3d = params["conv_weight"]                   # (Cout, C, 3(d), 3(kh), 3(kw))
    w2d = w3d.reshape(cout, cin, 3, 3)            # channel index = ci*3 + d
    w_t = jnp.transpose(w2d, (2, 3, 1, 0))        # (kh, kw, Cin, Cout)
    w_t = jnp.pad(w_t, ((0, 0), (0, 0), (0, cin_p - cin), (0, cout_p - cout)))
    w_k = w_t.reshape(3, 3 * cin_p, cout_p).astype(jnp.bfloat16)

    # BN3d (eval-mode running statistics) fused into per-channel scale/shift.
    scale = params["bn_gamma"] / jnp.sqrt(params["bn_var"] + eps)
    shift = params["bn_beta"] - params["bn_mean"] * scale
    scale = jnp.pad(scale, (0, cout_p - cout)).reshape(1, cout_p).astype(jnp.float32)
    shift = jnp.pad(shift, (0, cout_p - cout)).reshape(1, cout_p).astype(jnp.float32)

    out_padded = pl.pallas_call(
        _pconv3x3_bn_relu_kernel,
        out_shape=jax.ShapeDtypeStruct((n, rows, wp, cout_p), jnp.bfloat16),
        grid_spec=pltpu.PrefetchScalarGridSpec(
            num_scalar_prefetch=0,
            grid=(n, t),
            in_specs=[
                pl.BlockSpec((None, th, wp + 2, cin_p),
                             lambda b, j: (b, j, 0, 0)),
                # Constant-index operands: never re-DMA'd across the grid.
                pl.BlockSpec((3, 3 * cin_p, cout_p), lambda b, j: (0, 0, 0)),
                pl.BlockSpec((1, cout_p), lambda b, j: (0, 0)),
                pl.BlockSpec((1, cout_p), lambda b, j: (0, 0)),
            ],
            out_specs=pl.BlockSpec((None, th, wp, cout_p),
                                   lambda b, j: (b, j, 0, 0)),
            scratch_shapes=[
                pltpu.VMEM((2, wp + 2, cin_p), jnp.bfloat16),           # carry
                pltpu.VMEM(((th + 2) * wp, 3 * cin_p), jnp.bfloat16),   # cc
            ]),
        compiler_params=pltpu.CompilerParams(
            # The row axis carries the 2-row halo scratch -> must stay
            # sequential ("arbitrary"); the batch axis is megacore-parallel.
            dimension_semantics=("parallel", "arbitrary"),
            vmem_limit_bytes=int(vmem_limit)),
    )(xp, w_k, scale, shift)

    # Output row q is real output row q-2; drop the 2 warm-up rows + padding.
    out_nhwc = out_padded[:, 2:2 + h, :w, :cout]              # (N, H, W, Cout) bf16
    # TODO(synk): if the consumer accepts NHWC / bf16, return out_nhwc directly
    # and skip this transpose (it is an extra HBM pass outside the kernel).
    return jnp.transpose(out_nhwc, (0, 3, 1, 2))              # NCHW, bf16


# ----------------------------- demo / check ----------------------------------

if __name__ == "__main__":
    key = jax.random.PRNGKey(0)
    k0, k1, k2, kw_, kg, kb = jax.random.split(key, 6)

    # Small shapes consistent with the module (channels shrunk from 256 -> 4).
    N, C, H, W = 2, 4, 16, 16
    x0 = jax.random.normal(k0, (N, C, H // 2, W // 2), jnp.float32)   # upsampled
    x1 = jax.random.normal(k1, (N, C, H, W), jnp.float32)             # reference size
    x2 = jax.random.normal(k2, (N, C, 2 * H, 2 * W), jnp.float32)     # max-pooled

    Cout = C
    params = {
        "conv_weight": 0.1 * jax.random.normal(kw_, (Cout, C, 3, 3, 3), jnp.float32),
        "bn_gamma": 1.0 + 0.1 * jax.random.normal(kg, (Cout,), jnp.float32),
        "bn_beta": 0.1 * jax.random.normal(kb, (Cout,), jnp.float32),
        "bn_mean": jnp.zeros((Cout,), jnp.float32),
        "bn_var": jnp.ones((Cout,), jnp.float32),
    }

    out = jax.block_until_ready(pconv_module_forward([x0, x1, x2], params))
    assert out.shape == (N, Cout, H, W), out.shape

    # Pure-JAX reference (Conv3d collapsed to a 2-D conv), with the same bf16
    # operand quantization as the kernel and f32 accumulation.
    x0r = _nearest_interpolate_nchw(x0, (H, W))
    x2r = _adaptive_max_pool2d_nchw(x2, (H, W))
    x_flat = jnp.stack([x0r, x1, x2r], axis=2).reshape(N, C * 3, H, W)
    w2d = params["conv_weight"].reshape(Cout, C * 3, 3, 3)
    ref = lax.conv_general_dilated(
        x_flat.astype(jnp.bfloat16), w2d.astype(jnp.bfloat16),
        window_strides=(1, 1), padding=((1, 1), (1, 1)),
        dimension_numbers=("NCHW", "OIHW", "NCHW"),
        preferred_element_type=jnp.float32)
    scale = params["bn_gamma"] / jnp.sqrt(params["bn_var"] + 1e-5)
    shift = params["bn_beta"] - params["bn_mean"] * scale
    ref = jnp.maximum(ref * scale[None, :, None, None]
                      + shift[None, :, None, None], 0.0)

    # Kernel emits bf16: compare with a relative tolerance covering bf16 ULPs.
    rel = jnp.max(jnp.abs(out.astype(jnp.float32) - ref) / (jnp.abs(ref) + 1.0))
    assert float(rel) < 3e-2, float(rel)

    print("KERNEL_OK")
</pallas_src>

<mosaic_0001>
module attributes {stable_mosaic.version = 11 : i64} {
  func.func @_pconv3x3_bn_relu_kernel(%arg0: i32, %arg1: i32, %arg2: memref<1x6x18x128xbf16, #tpu.memory_space<vmem>>, %arg3: memref<3x384x128xbf16, #tpu.memory_space<vmem>>, %arg4: memref<1x128xf32, #tpu.memory_space<vmem>>, %arg5: memref<1x128xf32, #tpu.memory_space<vmem>>, %arg6: memref<1x6x16x128xbf16, #tpu.memory_space<vmem>>, %arg7: memref<2x18x128xbf16, #tpu.memory_space<vmem>>, %arg8: memref<128x384xbf16, #tpu.memory_space<vmem>>) attributes {dimension_semantics = [#tpu.dimension_semantics<parallel>, #tpu.dimension_semantics<arbitrary>], iteration_bounds = array<i64: 2, 3>, scalar_prefetch = 0 : i64, scratch_operands = 2 : i64, tpu.core_type = #tpu.core_type<tc>, window_params = [{transform_indices = @transform_0, window_bounds = array<i64: 1, 6, 18, 128>}, {pipeline_mode = #tpu.pipeline_mode<synchronous>, transform_indices = @transform_1, window_bounds = array<i64: 3, 384, 128>}, {pipeline_mode = #tpu.pipeline_mode<synchronous>, transform_indices = @transform_2, window_bounds = array<i64: 1, 128>}, {pipeline_mode = #tpu.pipeline_mode<synchronous>, transform_indices = @transform_3, window_bounds = array<i64: 1, 128>}, {transform_indices = @transform_4, window_bounds = array<i64: 1, 6, 16, 128>}]} {
    %c0_i32 = arith.constant 0 : i32
    %0 = arith.cmpi eq, %arg1, %c0_i32 : i32
    %1 = arith.extui %0 : i1 to i32
    %c0_i32_0 = arith.constant 0 : i32
    %2 = arith.cmpi ne, %1, %c0_i32_0 : i32
    scf.if %2 {
      %cst_59 = arith.constant 0.000000e+00 : bf16
      %54 = vector.broadcast %cst_59 : bf16 to vector<2x18x128xbf16>
      %c0_60 = arith.constant 0 : index
      %c0_61 = arith.constant 0 : index
      %c0_62 = arith.constant 0 : index
      %55 = vector.load %arg7[%c0_60, %c0_61, %c0_62] : memref<2x18x128xbf16, #tpu.memory_space<vmem>>, vector<2x18x128xbf16>
      tpu.vector_store %arg7[%c0_60, %c0_61, %c0_62], %54 {strides = array<i32>} : memref<2x18x128xbf16, #tpu.memory_space<vmem>>, vector<2x18x128xbf16>,
    } else {
    }
    %c0 = arith.constant 0 : index
    %c0_1 = arith.constant 0 : index
    %c0_2 = arith.constant 0 : index
    %3 = vector.load %arg7[%c0, %c0_1, %c0_2] : memref<2x18x128xbf16, #tpu.memory_space<vmem>>, vector<2x16x128xbf16>
    %4 = vector.shape_cast %3 : vector<2x16x128xbf16> to vector<32x128xbf16>
    %c0_3 = arith.constant 0 : index
    %c0_4 = arith.constant 0 : index
    %5 = vector.load %arg8[%c0_3, %c0_4] : memref<128x384xbf16, #tpu.memory_space<vmem>>, vector<32x128xbf16>
    tpu.vector_store %arg8[%c0_3, %c0_4], %4 {strides = array<i32>} : memref<128x384xbf16, #tpu.memory_space<vmem>>, vector<32x128xbf16>,
    %c0_5 = arith.constant 0 : index
    %c0_6 = arith.constant 0 : index
    %c0_7 = arith.constant 0 : index
    %c0_8 = arith.constant 0 : index
    %6 = vector.load %arg2[%c0_5, %c0_6, %c0_7, %c0_8] : memref<1x6x18x128xbf16, #tpu.memory_space<vmem>>, vector<1x6x16x128xbf16>
    %7 = vector.shape_cast %6 : vector<1x6x16x128xbf16> to vector<6x16x128xbf16>
    %8 = vector.shape_cast %7 : vector<6x16x128xbf16> to vector<96x128xbf16>
    %c32 = arith.constant 32 : index
    %c0_9 = arith.constant 0 : index
    %9 = vector.load %arg8[%c32, %c0_9] : memref<128x384xbf16, #tpu.memory_space<vmem>>, vector<96x128xbf16>
    tpu.vector_store %arg8[%c32, %c0_9], %8 {strides = array<i32>} : memref<128x384xbf16, #tpu.memory_space<vmem>>, vector<96x128xbf16>,
    %c0_10 = arith.constant 0 : index
    %c1 = arith.constant 1 : index
    %c0_11 = arith.constant 0 : index
    %10 = vector.load %arg7[%c0_10, %c1, %c0_11] : memref<2x18x128xbf16, #tpu.memory_space<vmem>>, vector<2x16x128xbf16>
    %11 = vector.shape_cast %10 : vector<2x16x128xbf16> to vector<32x128xbf16>
    %c0_12 = arith.constant 0 : index
    %c128 = arith.constant 128 : index
    %12 = vector.load %arg8[%c0_12, %c128] : memref<128x384xbf16, #tpu.memory_space<vmem>>, vector<32x128xbf16>
    tpu.vector_store %arg8[%c0_12, %c128], %11 {strides = array<i32>} : memref<128x384xbf16, #tpu.memory_space<vmem>>, vector<32x128xbf16>,
    %c0_13 = arith.constant 0 : index
    %c0_14 = arith.constant 0 : index
    %c1_15 = arith.constant 1 : index
    %c0_16 = arith.constant 0 : index
    %13 = vector.load %arg2[%c0_13, %c0_14, %c1_15, %c0_16] : memref<1x6x18x128xbf16, #tpu.memory_space<vmem>>, vector<1x6x16x128xbf16>
    %14 = vector.shape_cast %13 : vector<1x6x16x128xbf16> to vector<6x16x128xbf16>
    %15 = vector.shape_cast %14 : vector<6x16x128xbf16> to vector<96x128xbf16>
    %c32_17 = arith.constant 32 : index
    %c128_18 = arith.constant 128 : index
    %16 = vector.load %arg8[%c32_17, %c128_18] : memref<128x384xbf16, #tpu.memory_space<vmem>>, vector<96x128xbf16>
    tpu.vector_store %arg8[%c32_17, %c128_18], %15 {strides = array<i32>} : memref<128x384xbf16, #tpu.memory_space<vmem>>, vector<96x128xbf16>,
    %c0_19 = arith.constant 0 : index
    %c2 = arith.constant 2 : index
    %c0_20 = arith.constant 0 : index
    %17 = vector.load %arg7[%c0_19, %c2, %c0_20] : memref<2x18x128xbf16, #tpu.memory_space<vmem>>, vector<2x16x128xbf16>
    %18 = vector.shape_cast %17 : vector<2x16x128xbf16> to vector<32x128xbf16>
    %c0_21 = arith.constant 0 : index
    %c256 = arith.constant 256 : index
    %19 = vector.load %arg8[%c0_21, %c256] : memref<128x384xbf16, #tpu.memory_space<vmem>>, vector<32x128xbf16>
    tpu.vector_store %arg8[%c0_21, %c256], %18 {strides = array<i32>} : memref<128x384xbf16, #tpu.memory_space<vmem>>, vector<32x128xbf16>,
    %c0_22 = arith.constant 0 : index
    %c0_23 = arith.constant 0 : index
    %c2_24 = arith.constant 2 : index
    %c0_25 = arith.constant 0 : index
    %20 = vector.load %arg2[%c0_22, %c0_23, %c2_24, %c0_25] : memref<1x6x18x128xbf16, #tpu.memory_space<vmem>>, vector<1x6x16x128xbf16>
    %21 = vector.shape_cast %20 : vector<1x6x16x128xbf16> to vector<6x16x128xbf16>
    %22 = vector.shape_cast %21 : vector<6x16x128xbf16> to vector<96x128xbf16>
    %c32_26 = arith.constant 32 : index
    %c256_27 = arith.constant 256 : index
    %23 = vector.load %arg8[%c32_26, %c256_27] : memref<128x384xbf16, #tpu.memory_space<vmem>>, vector<96x128xbf16>
    tpu.vector_store %arg8[%c32_26, %c256_27], %22 {strides = array<i32>} : memref<128x384xbf16, #tpu.memory_space<vmem>>, vector<96x128xbf16>,
    %c0_28 = arith.constant 0 : index
    %c4 = arith.constant 4 : index
    %c0_29 = arith.constant 0 : index
    %c0_30 = arith.constant 0 : index
    %24 = vector.load %arg2[%c0_28, %c4, %c0_29, %c0_30] : memref<1x6x18x128xbf16, #tpu.memory_space<vmem>>, vector<1x2x18x128xbf16>
    %25 = vector.shape_cast %24 : vector<1x2x18x128xbf16> to vector<2x18x128xbf16>
    %c0_31 = arith.constant 0 : index
    %c0_32 = arith.constant 0 : index
    %c0_33 = arith.constant 0 : index
    %26 = vector.load %arg7[%c0_31, %c0_32, %c0_33] : memref<2x18x128xbf16, #tpu.memory_space<vmem>>, vector<2x18x128xbf16>
    tpu.vector_store %arg7[%c0_31, %c0_32, %c0_33], %25 {strides = array<i32>} : memref<2x18x128xbf16, #tpu.memory_space<vmem>>, vector<2x18x128xbf16>,
    %c0_34 = arith.constant 0 : index
    %c0_35 = arith.constant 0 : index
    %27 = vector.load %arg8[%c0_34, %c0_35] : memref<128x384xbf16, #tpu.memory_space<vmem>>, vector<96x384xbf16>
    %c0_36 = arith.constant 0 : index
    %c0_37 = arith.constant 0 : index
    %c0_38 = arith.constant 0 : index
    %28 = vector.load %arg3[%c0_36, %c0_37, %c0_38] : memref<3x384x128xbf16, #tpu.memory_space<vmem>>, vector<1x384x128xbf16>
    %29 = vector.shape_cast %28 : vector<1x384x128xbf16> to vector<384x128xbf16>
    %cst = arith.constant dense<0.000000e+00> : vector<96x128xf32>
    %30 = tpu.matmul %27, %29, %cst {dimension_numbers = #tpu.dot_dimension_numbers<[1], [0], [0], [1], [0, 0, 1, 1], [], []>} : vector<96x384xbf16>, vector<384x128xbf16>, vector<96x128xf32> -> vector<96x128xf32>
    %c16 = arith.constant 16 : index
    %c0_39 = arith.constant 0 : index
    %31 = vector.load %arg8[%c16, %c0_39] : memref<128x384xbf16, #tpu.memory_space<vmem>>, vector<96x384xbf16>
    %c1_40 = arith.constant 1 : index
    %c0_41 = arith.constant 0 : index
    %c0_42 = arith.constant 0 : index
    %32 = vector.load %arg3[%c1_40, %c0_41, %c0_42] : memref<3x384x128xbf16, #tpu.memory_space<vmem>>, vector<1x384x128xbf16>
    %33 = vector.shape_cast %32 : vector<1x384x128xbf16> to vector<384x128xbf16>
    %cst_43 = arith.constant dense<0.000000e+00> : vector<96x128xf32>
    %34 = tpu.matmul %31, %33, %cst_43 {dimension_numbers = #tpu.dot_dimension_numbers<[1], [0], [0], [1], [0, 0, 1, 1], [], []>} : vector<96x384xbf16>, vector<384x128xbf16>, vector<96x128xf32> -> vector<96x128xf32>
    %35 = arith.addf %30, %34 : vector<96x128xf32>
    %c32_44 = arith.constant 32 : index
    %c0_45 = arith.constant 0 : index
    %36 = vector.load %arg8[%c32_44, %c0_45] : memref<128x384xbf16, #tpu.memory_space<vmem>>, vector<96x384xbf16>
    %c2_46 = arith.constant 2 : index
    %c0_47 = arith.constant 0 : index
    %c0_48 = arith.constant 0 : index
    %37 = vector.load %arg3[%c2_46, %c0_47, %c0_48] : memref<3x384x128xbf16, #tpu.memory_space<vmem>>, vector<1x384x128xbf16>
    %38 = vector.shape_cast %37 : vector<1x384x128xbf16> to vector<384x128xbf16>
    %cst_49 = arith.constant dense<0.000000e+00> : vector<96x128xf32>
    %39 = tpu.matmul %36, %38, %cst_49 {dimension_numbers = #tpu.dot_dimension_numbers<[1], [0], [0], [1], [0, 0, 1, 1], [], []>} : vector<96x384xbf16>, vector<384x128xbf16>, vector<96x128xf32> -> vector<96x128xf32>
    %40 = arith.addf %35, %39 : vector<96x128xf32>
    %c0_50 = arith.constant 0 : index
    %c0_51 = arith.constant 0 : index
    %41 = vector.load %arg4[%c0_50, %c0_51] : memref<1x128xf32, #tpu.memory_space<vmem>>, vector<1x128xf32>
    %42 = vector.broadcast %41 : vector<1x128xf32> to vector<96x128xf32>
    %43 = arith.mulf %40, %42 : vector<96x128xf32>
    %c0_52 = arith.constant 0 : index
    %c0_53 = arith.constant 0 : index
    %44 = vector.load %arg5[%c0_52, %c0_53] : memref<1x128xf32, #tpu.memory_space<vmem>>, vector<1x128xf32>
    %45 = vector.broadcast %44 : vector<1x128xf32> to vector<96x128xf32>
    %46 = arith.addf %43, %45 : vector<96x128xf32>
    %cst_54 = arith.constant 0.000000e+00 : f32
    %47 = vector.broadcast %cst_54 : f32 to vector<96x128xf32>
    %48 = arith.maximumf %46, %47 : vector<96x128xf32>
    %49 = vector.shape_cast %48 : vector<96x128xf32> to vector<6x16x128xf32>
    %50 = arith.truncf %49 : vector<6x16x128xf32> to vector<6x16x128xbf16>
    %c0_55 = arith.constant 0 : index
    %c0_56 = arith.constant 0 : index
    %c0_57 = arith.constant 0 : index
    %c0_58 = arith.constant 0 : index
    %51 = vector.load %arg6[%c0_55, %c0_56, %c0_57, %c0_58] : memref<1x6x16x128xbf16, #tpu.memory_space<vmem>>, vector<1x6x16x128xbf16>
    %52 = vector.shape_cast %51 : vector<1x6x16x128xbf16> to vector<6x16x128xbf16>
    %53 = vector.shape_cast %50 : vector<6x16x128xbf16> to vector<1x6x16x128xbf16>
    tpu.vector_store %arg6[%c0_55, %c0_56, %c0_57, %c0_58], %53 {strides = array<i32>} : memref<1x6x16x128xbf16, #tpu.memory_space<vmem>>, vector<1x6x16x128xbf16>,
    return
  }
  func.func @transform_0(%arg0: i32, %arg1: i32) -> (i32, i32, i32, i32) {
    %c0_i32 = arith.constant 0 : i32
    %c0_i32_0 = arith.constant 0 : i32
    %c0_i32_1 = arith.constant 0 : i32
    return %arg0, %arg1, %c0_i32, %c0_i32_0 : i32, i32, i32, i32
  }
  func.func @transform_1(%arg0: i32, %arg1: i32) -> (i32, i32, i32) {
    %c0_i32 = arith.constant 0 : i32
    %c0_i32_0 = arith.constant 0 : i32
    %c0_i32_1 = arith.constant 0 : i32
    %c0_i32_2 = arith.constant 0 : i32
    return %c0_i32, %c0_i32_0, %c0_i32_1 : i32, i32, i32
  }
  func.func @transform_2(%arg0: i32, %arg1: i32) -> (i32, i32) {
    %c0_i32 = arith.constant 0 : i32
    %c0_i32_0 = arith.constant 0 : i32
    %c0_i32_1 = arith.constant 0 : i32
    return %c0_i32, %c0_i32_0 : i32, i32
  }
  func.func @transform_3(%arg0: i32, %arg1: i32) -> (i32, i32) {
    %c0_i32 = arith.constant 0 : i32
    %c0_i32_0 = arith.constant 0 : i32
    %c0_i32_1 = arith.constant 0 : i32
    return %c0_i32, %c0_i32_0 : i32, i32
  }
  func.func @transform_4(%arg0: i32, %arg1: i32) -> (i32, i32, i32, i32) {
    %c0_i32 = arith.constant 0 : i32
    %c0_i32_0 = arith.constant 0 : i32
    %c0_i32_1 = arith.constant 0 : i32
    return %arg0, %arg1, %c0_i32, %c0_i32_0 : i32, i32, i32, i32
  }
}

</mosaic_0001>

<llo_original>
// kernel: tpu_custom_call.1
$region0: #{tpu_custom_call.1}
  #allocation0 [shape = 'u32[]', space=smem, size = 0x4, offset = 0x4, fixed_abs, tag = 'smem constant byte address 0x4 - core index']
  #allocation1 [shape = 'u32[144,128]{1,0:T(1,128)}', space=vmem, size = 0x12000, scoped, tag = 'internal scratch']
  #allocation2 [shape = 'bf16[2,18,128]{2,1,0:T(8,128)(2,1)}', space=vmem, size = 0x3000, scoped, tag = 'scratch operand']
  #allocation3 [shape = 'bf16[128,384]{1,0:T(8,128)(2,1)}', space=vmem, size = 0x18000, scoped, tag = 'scratch operand']
  %s0 = inlined_call_operand.vmem [shape: bf16[2,18,18,128], index: 0, kind: input, shape index: {}]
  %s1 = inlined_call_operand.vmem [shape: bf16[3,384,128], index: 1, kind: input, shape index: {}]
  %s2 = inlined_call_operand.vmem [shape: f32[1,128], index: 2, kind: input, shape index: {}]
  %s3 = inlined_call_operand.vmem [shape: f32[1,128], index: 3, kind: input, shape index: {}]
  %s4 = inlined_call_operand.hbm [shape: bf16[2,18,16,128], index: 4, kind: output, shape index: {}]
  %s5 = sld [smem:[#allocation0]]
  $region53: #{tpu_custom_call.1} parent=0
    _
  %s7 = ssub.s32 1, %s5
  %s8 = scalar_select 0, %s7, %s5
  $region1: #{tpu_custom_call.1} parent=0
    #allocation4 [shape = 'u8[49152]{0}', space=vmem, size = 0xc000, scoped, tag = 'output window, operand 0']
    #allocation5 [shape = 's32[2]{0}', space=sflag, size = 0x8, scoped, tag = 'scoped memory for tpu_custom_call.1']
    %9 = vsyncpa [#allocation5], 0
    %s10 = scalar_lea.sflag [#allocation5], 1
    %11 = vsyncpa %s10, 0
    loop: start=0, step=1, limit=8
    $region2: #{tpu_custom_call.1} parent=1 // loop_pre_header
      _
    $region3: #{tpu_custom_call.1} parent=1 // loop_header
      %s13 = sphi 0, %s17
      %p14 = scmp.ge.s32.totalorder %s13, 8
      %s20 = sphi 0, %s32
      %s21 = sphi 0, %s28
      %s22 = sphi 0, %s20
      %s23 = sphi 0, %s21
      %s24 = sphi 0, %s22
      %s25 = sphi 0, %s23
      %s37 = sphi 0, %s39
      %s40 = sphi 0, %s37
      %s41 = sphi 0, %s40
      %s57 = sphi 0, %s41
      %s61 = sphi 0, %s61
      %s63 = sphi 0, %s61
      %s64 = sphi 0, %s63
      %s78 = sphi 0, %s64
      %s82 = sphi 0, %s82
      %s84 = sphi 0, %s82
      %s85 = sphi 0, %s84
      %s99 = sphi 0, %s85
      %s103 = sphi 0, %s103
      %s105 = sphi 0, %s103
      %s106 = sphi 0, %s105
      %s120 = sphi 0, %s106
      %s128 = sphi 0, %s130
      %s131 = sphi 0, %s128
      %s132 = sphi 0, %s131
      %s148 = sphi 0, %s132
    $region4: #{tpu_custom_call.1} parent=1 // loop_header_branch
      %16 = sbr.rel (%p14) target = $region8
    $region5: #{tpu_custom_call.1} parent=1 // loop_body
      %s18 = ssub.s32 %s13, 1
      %s19 = ssub.s32 %s13, 2
      %s26 = sadd.s32 1, %s21
      %p27 = scmp.ge.s32.totalorder %s26, 3
      %s28 = scalar_select %p27, 0, %s26
      %s29 = sadd.s32 1, %s20
      %s30 = scalar_select %p27, %s29, %s20
      %p31 = scmp.ge.s32.totalorder %s30, 2
      %s32 = scalar_select %p31, 0, %s30
      %s33 = ssub.s32 %s20, %s32
      %s34 = ssub.s32 %s21, %s28
      %s35 = sor.u32 %s33, %s34
      %p36 = scmp.eq.s32.totalorder %s35, 0
      %s38 = sadd.s32 %s37, 1
      %s39 = scalar_select %p36, %s37, %s38
      %p42 = pneg %p36
      %p43 = scmp.eq.s32.totalorder %s13, 5
      %p44 = por %p42, %p43
      %p45 = scmp.ne.s32.totalorder %s37, %s40
      %p46 = scmp.eq.s32.totalorder %s13, 0
      %p47 = por %p45, %p46
      %p48 = scmp.ne.s32.totalorder %s37, %s40
      %p49 = scmp.eq.s32.totalorder %s18, 5
      %p50 = por %p48, %p49
      %p51 = scmp.ne.s32.totalorder %s40, %s41
      %p52 = scmp.eq.s32.totalorder %s18, 0
      %p53 = por %p51, %p52
      %p54 = scmp.ne.s32.totalorder %s40, %s41
      %p55 = scmp.eq.s32.totalorder %s19, 5
      %p56 = por %p54, %p55
      %p58 = scmp.ne.s32.totalorder %s41, %s57
      %p59 = scmp.eq.s32.totalorder %s19, 0
      %p60 = por %p58, %p59
      %s62 = sadd.s32 %s61, 1
      %p65 = scmp.eq.s32.totalorder %s13, 5
      %p66 = scmp.ne.s32.totalorder %s61, %s63
      %p67 = scmp.eq.s32.totalorder %s13, 0
      %p68 = por %p66, %p67
      %p69 = scmp.ne.s32.totalorder %s61, %s63
      %p70 = scmp.eq.s32.totalorder %s18, 5
      %p71 = por %p69, %p70
      %p72 = scmp.ne.s32.totalorder %s63, %s64
      %p73 = scmp.eq.s32.totalorder %s18, 0
      %p74 = por %p72, %p73
      %p75 = scmp.ne.s32.totalorder %s63, %s64
      %p76 = scmp.eq.s32.totalorder %s19, 5
      %p77 = por %p75, %p76
      %p79 = scmp.ne.s32.totalorder %s64, %s78
      %p80 = scmp.eq.s32.totalorder %s19, 0
      %p81 = por %p79, %p80
      %s83 = sadd.s32 %s82, 1
      %p86 = scmp.eq.s32.totalorder %s13, 5
      %p87 = scmp.ne.s32.totalorder %s82, %s84
      %p88 = scmp.eq.s32.totalorder %s13, 0
      %p89 = por %p87, %p88
      %p90 = scmp.ne.s32.totalorder %s82, %s84
      %p91 = scmp.eq.s32.totalorder %s18, 5
      %p92 = por %p90, %p91
      %p93 = scmp.ne.s32.totalorder %s84, %s85
      %p94 = scmp.eq.s32.totalorder %s18, 0
      %p95 = por %p93, %p94
      %p96 = scmp.ne.s32.totalorder %s84, %s85
      %p97 = scmp.eq.s32.totalorder %s19, 5
      %p98 = por %p96, %p97
      %p100 = scmp.ne.s32.totalorder %s85, %s99
      %p101 = scmp.eq.s32.totalorder %s19, 0
      %p102 = por %p100, %p101
      %s104 = sadd.s32 %s103, 1
      %p107 = scmp.eq.s32.totalorder %s13, 5
      %p108 = scmp.ne.s32.totalorder %s103, %s105
      %p109 = scmp.eq.s32.totalorder %s13, 0
      %p110 = por %p108, %p109
      %p111 = scmp.ne.s32.totalorder %s103, %s105
      %p112 = scmp.eq.s32.totalorder %s18, 5
      %p113 = por %p111, %p112
      %p114 = scmp.ne.s32.totalorder %s105, %s106
      %p115 = scmp.eq.s32.totalorder %s18, 0
      %p116 = por %p114, %p115
      %p117 = scmp.ne.s32.totalorder %s105, %s106
      %p118 = scmp.eq.s32.totalorder %s19, 5
      %p119 = por %p117, %p118
      %p121 = scmp.ne.s32.totalorder %s106, %s120
      %p122 = scmp.eq.s32.totalorder %s19, 0
      %p123 = por %p121, %p122
      %s124 = ssub.s32 %s20, %s32
      %s125 = ssub.s32 %s21, %s28
      %s126 = sor.u32 %s124, %s125
      %p127 = scmp.eq.s32.totalorder %s126, 0
      %s129 = sadd.s32 %s128, 1
      %s130 = scalar_select %p127, %s128, %s129
      %p133 = pneg %p127
      %p134 = scmp.eq.s32.totalorder %s13, 5
      %p135 = por %p133, %p134
      %p136 = scmp.ne.s32.totalorder %s128, %s131
      %p137 = scmp.eq.s32.totalorder %s13, 0
      %p138 = por %p136, %p137
      %p139 = scmp.ne.s32.totalorder %s128, %s131
      %p140 = scmp.eq.s32.totalorder %s18, 5
      %p141 = por %p139, %p140
      %p142 = scmp.ne.s32.totalorder %s131, %s132
      %p143 = scmp.eq.s32.totalorder %s18, 0
      %p144 = por %p142, %p143
      %p145 = scmp.ne.s32.totalorder %s131, %s132
      %p146 = scmp.eq.s32.totalorder %s19, 5
      %p147 = por %p145, %p146
      %p149 = scmp.ne.s32.totalorder %s132, %s148
      %p150 = scmp.eq.s32.totalorder %s19, 0
      %p151 = por %p149, %p150
      %p152 = scmp.le.s32.totalorder 1, %s13
      %p153 = scmp.lt.s32.totalorder %s13, 7
      %p154 = pnand %p152, %p153
      %p155 = pneg %p154
      // Predicated region
      $region9: #{tpu_custom_call.1} parent=5 // pred_check
        _
      $region10: #{tpu_custom_call.1} parent=5 // pred_check_branch
        %157 = sbr.rel (%p154) target = $region12
      $region11: #{tpu_custom_call.1} parent=5 // pred_region
        %s158 = ssub.s32 %s13, 1
        // Predicated region
        $region13: #{tpu_custom_call.1} parent=11 // pred_check
          %p159 = pneg %p74
        $region14: #{tpu_custom_call.1} parent=11 // pred_check_branch
          %161 = sbr.rel (%p159) target = $region16
        $region15: #{tpu_custom_call.1} parent=11 // pred_region
          _
        $region16: #{tpu_custom_call.1} parent=11 // pred_fallthru
          _
        // Predicated region
        $region17: #{tpu_custom_call.1} parent=11 // pred_check
          %p162 = pneg %p95
        $region18: #{tpu_custom_call.1} parent=11 // pred_check_branch
          %164 = sbr.rel (%p162) target = $region20
        $region19: #{tpu_custom_call.1} parent=11 // pred_region
          _
        $region20: #{tpu_custom_call.1} parent=11 // pred_fallthru
          _
        // Predicated region
        $region21: #{tpu_custom_call.1} parent=11 // pred_check
          %p165 = pneg %p116
        $region22: #{tpu_custom_call.1} parent=11 // pred_check_branch
          %167 = sbr.rel (%p165) target = $region24
        $region23: #{tpu_custom_call.1} parent=11 // pred_region
          _
        $region24: #{tpu_custom_call.1} parent=11 // pred_fallthru
          _
      $region12: #{tpu_custom_call.1} parent=5 // pred_fallthru
        _
      %p168 = scmp.lt.s32.totalorder %s13, 6
      // Predicated region
      $region25: #{tpu_custom_call.1} parent=5 // pred_check
        %p169 = pneg %p168
      $region26: #{tpu_custom_call.1} parent=5 // pred_check_branch
        %171 = sbr.rel (%p169) target = $region28
      $region27: #{tpu_custom_call.1} parent=5 // pred_region
        // Predicated region
        $region29: #{tpu_custom_call.1} parent=27 // pred_check
          %p172 = pneg %p47
        $region30: #{tpu_custom_call.1} parent=27 // pred_check_branch
          %174 = sbr.rel (%p172) target = $region32
        $region31: #{tpu_custom_call.1} parent=27 // pred_region
          %s175 = smul.u32 6, %s21
          %p176 = scmp.lt.s32.totalorder %s20, 1
          %s177 = scalar_select %p176, %s20, 1
          %p178 = scmp.lt.s32.totalorder %s175, 17
          %s179 = scalar_select %p178, %s175, 17
          %s180 = smul.addr %s179, 3
          %s181 = smul.addr %s177, 54
          %s182 = sadd.s32 %s180, %s181
          %s183 = smul.addr %s182, 4
          %s184 = scalar_lea.vmem %s0, %s183
          %s185 = smul.u32 6, %s21
        $region32: #{tpu_custom_call.1} parent=27 // pred_fallthru
          _
      $region28: #{tpu_custom_call.1} parent=5 // pred_fallthru
        _
      %p186 = scmp.le.s32.totalorder 1, %s13
      %p187 = scmp.lt.s32.totalorder %s13, 7
      %p188 = pnand %p186, %p187
      %p189 = pneg %p188
      // Predicated region
      $region33: #{tpu_custom_call.1} parent=5 // pred_check
        _
      $region34: #{tpu_custom_call.1} parent=5 // pred_check_branch
        %191 = sbr.rel (%p188) target = $region36
      $region35: #{tpu_custom_call.1} parent=5 // pred_region
        %s192 = ssub.s32 %s13, 1
        %s193 = smul.u32 6, %s23
        %p194 = scmp.lt.s32.totalorder %s22, 1
        %s195 = scalar_select %p194, %s22, 1
        %p196 = scmp.lt.s32.totalorder %s193, 17
        %s197 = scalar_select %p196, %s193, 17
        %s198 = smul.addr %s197, 3
        %s199 = smul.addr %s195, 54
        %s200 = sadd.s32 %s198, %s199
        %s201 = smul.addr %s200, 4
        %s202 = scalar_lea.vmem %s0, %s201
        %p203 = pneg %p53
        %p204 = pneg %p50
        %p205 = pneg %p74
        %p206 = pneg %p71
        %p207 = pneg %p95
        %p208 = pneg %p92
        %p209 = pneg %p116
        %p210 = pneg %p113
        %p211 = pneg %p144
        %p212 = pneg %p141
        %s213 = sand.u32 %s131, 1
        %s214 = scalar_lea.sflag [#allocation5], %s213
        %s215 = sand.u32 %s131, 1
        %s216 = smul.addr %s215, 48
        %s217 = scalar_lea.vmem [#allocation4], %s216
        %s218 = smul.u32 6, %s23
        %p219 = scmp.lt.s32.totalorder %s22, 1
        %s220 = scalar_select %p219, %s22, 1
        %p221 = scmp.lt.s32.totalorder %s218, 17
        %s222 = scalar_select %p221, %s218, 17
        %s223 = smul.addr %s222, 3
        %s224 = smul.addr %s220, 54
        %s225 = sadd.s32 %s223, %s224
        %s226 = smul.addr %s225, 4
        %s227 = scalar_lea.vmem %s0, %s226
        %s228 = smul.u32 6, %s23
        %s229 = smul.u32 6, %s23
        %p231 = scmp.eq.s32.totalorder %s23, 0
        // Predicated region
        $region37: #{tpu_custom_call.1} parent=35 // pred_check
          %p232 = pneg %p231
        $region38: #{tpu_custom_call.1} parent=35 // pred_check_branch
          %234 = sbr.rel (%p232) target = $region40
        $region39: #{tpu_custom_call.1} parent=35 // pred_region
          %235 = vst [vmem:[#allocation2] sm:$0xf] 0
          %236 = vst [vmem:[#allocation2 + $0x4] sm:$0xf] 0
          %237 = vst [vmem:[#allocation2 + $0x8] sm:$0x1] 0
          %238 = vst [vmem:[#allocation2 + $0xc] sm:$0xf] 0
          %239 = vst [vmem:[#allocation2 + $0x10] sm:$0xf] 0
          %240 = vst [vmem:[#allocation2 + $0x14] sm:$0x1] 0
        $region40: #{tpu_custom_call.1} parent=35 // pred_fallthru
          _
        %v241 = vld [vmem:[#allocation2] sm:$0xf]
        %v242 = vld [vmem:[#allocation2 + $0x4] sm:$0xf]
        %v243 = vld [vmem:[#allocation2 + $0xc] sm:$0xf]
        %v244 = vld [vmem:[#allocation2 + $0x10] sm:$0xf]
        %245 = vst [vmem:[#allocation3] sm:$0xf] %v241
        %246 = vst [vmem:[#allocation3 + $0xc] sm:$0xf] %v242
        %247 = vst [vmem:[#allocation3 + $0x18] sm:$0xf] %v243
        %248 = vst [vmem:[#allocation3 + $0x24] sm:$0xf] %v244
        %v249 = vld [vmem:[%s227] sm:$0xf]
        %v250 = vld [vmem:[%s227 + $0x4] sm:$0xf]
        %v251 = vld [vmem:[%s227 + $0xc] sm:$0xf]
        %v252 = vld [vmem:[%s227 + $0x10] sm:$0xf]
        %v253 = vld [vmem:[%s227 + $0x18] sm:$0xf]
        %v254 = vld [vmem:[%s227 + $0x1c] sm:$0xf]
        %v255 = vld [vmem:[%s227 + $0x24] sm:$0xf]
        %v256 = vld [vmem:[%s227 + $0x28] sm:$0xf]
        %v257 = vld [vmem:[%s227 + $0x30] sm:$0xf]
        %v258 = vld [vmem:[%s227 + $0x34] sm:$0xf]
        %v259 = vld [vmem:[%s227 + $0x3c] sm:$0xf]
        %v260 = vld [vmem:[%s227 + $0x40] sm:$0xf]
        %261 = vst [vmem:[#allocation3 + $0x30] sm:$0xf] %v249
        %262 = vst [vmem:[#allocation3 + $0x3c] sm:$0xf] %v250
        %263 = vst [vmem:[#allocation3 + $0x48] sm:$0xf] %v251
        %264 = vst [vmem:[#allocation3 + $0x54] sm:$0xf] %v252
        %265 = vst [vmem:[#allocation3 + $0x60] sm:$0xf] %v253
        %266 = vst [vmem:[#allocation3 + $0x6c] sm:$0xf] %v254
        %267 = vst [vmem:[#allocation3 + $0x78] sm:$0xf] %v255
        %268 = vst [vmem:[#allocation3 + $0x84] sm:$0xf] %v256
        %269 = vst [vmem:[#allocation3 + $0x90] sm:$0xf] %v257
        %270 = vst [vmem:[#allocation3 + $0x9c] sm:$0xf] %v258
        %271 = vst [vmem:[#allocation3 + $0xa8] sm:$0xf] %v259
        %272 = vst [vmem:[#allocation3 + $0xb4] sm:$0xf] %v260
        %v273 = vld [vmem:[#allocation2] sm:$0xf]
        %v274 = vld [vmem:[#allocation2 + $0x4] sm:$0xf]
        %v275 = vld [vmem:[#allocation2 + $0x8] sm:$0x1]
        %v276 = vld [vmem:[#allocation2 + $0xc] sm:$0xf]
        %v277 = vld [vmem:[#allocation2 + $0x10] sm:$0xf]
        %v278 = vld [vmem:[#allocation2 + $0x14] sm:$0x1]
        %vm279 = vsmask.f32 3328
        %vm280 = vsmask.f32 7440
        %vm281 = vmor %vm279, %vm280
        %v283 = vshrl.u32 %v273, 16
        %v285 = vrot.slane %v283, 4
        %v286 = vshll.u32 %v273, 16
        %v288 = vrot.slane %v286, 5
        %v289 = vor.u32 %v285, %v288
        %v290 = vrot.slane %v289, 4
        %v292 = vshll.u32 %v274, 16
        %v294 = vrot.slane %v292, 5
        %v295 = vsel %vm281, %v290, %v294
        %v296 = vshrl.u32 %v274, 16
        %v298 = vrot.slane %v296, 4
        %v299 = vor.u32 %v298, %v294
        %v300 = vrot.slane %v299, 4
        %v302 = vshll.u32 %v275, 16
        %v304 = vrot.slane %v302, 5
        %v305 = vsel %vm281, %v300, %v304
        %v307 = vshrl.u32 %v276, 16
        %v309 = vrot.slane %v307, 4
        %v310 = vshll.u32 %v276, 16
        %v312 = vrot.slane %v310, 5
        %v313 = vor.u32 %v309, %v312
        %v314 = vrot.slane %v313, 4
        %v316 = vshll.u32 %v277, 16
        %v318 = vrot.slane %v316, 5
        %v319 = vsel %vm281, %v314, %v318
        %v320 = vshrl.u32 %v277, 16
        %v322 = vrot.slane %v320, 4
        %v323 = vor.u32 %v322, %v318
        %v324 = vrot.slane %v323, 4
        %v326 = vshll.u32 %v278, 16
        %v328 = vrot.slane %v326, 5
        %v329 = vsel %vm281, %v324, %v328
        %334 = vst [vmem:[#allocation3 + $0x4] sm:$0xf] %v295
        %335 = vst [vmem:[#allocation3 + $0x10] sm:$0xf] %v305
        %336 = vst [vmem:[#allocation3 + $0x1c] sm:$0xf] %v319
        %337 = vst [vmem:[#allocation3 + $0x28] sm:$0xf] %v329
        %v338 = vld [vmem:[%s227] sm:$0xf]
        %v339 = vld [vmem:[%s227 + $0x4] sm:$0xf]
        %v340 = vld [vmem:[%s227 + $0x8] sm:$0x1]
        %v341 = vld [vmem:[%s227 + $0xc] sm:$0xf]
        %v342 = vld [vmem:[%s227 + $0x10] sm:$0xf]
        %v343 = vld [vmem:[%s227 + $0x14] sm:$0x1]
        %v344 = vld [vmem:[%s227 + $0x18] sm:$0xf]
        %v345 = vld [vmem:[%s227 + $0x1c] sm:$0xf]
        %v346 = vld [vmem:[%s227 + $0x20] sm:$0x1]
        %v347 = vld [vmem:[%s227 + $0x24] sm:$0xf]
        %v348 = vld [vmem:[%s227 + $0x28] sm:$0xf]
        %v349 = vld [vmem:[%s227 + $0x2c] sm:$0x1]
        %v350 = vld [vmem:[%s227 + $0x30] sm:$0xf]
        %v351 = vld [vmem:[%s227 + $0x34] sm:$0xf]
        %v352 = vld [vmem:[%s227 + $0x38] sm:$0x1]
        %v353 = vld [vmem:[%s227 + $0x3c] sm:$0xf]
        %v354 = vld [vmem:[%s227 + $0x40] sm:$0xf]
        %v355 = vld [vmem:[%s227 + $0x44] sm:$0x1]
        %v357 = vshrl.u32 %v338, 16
        %v359 = vrot.slane %v357, 4
        %v360 = vshll.u32 %v338, 16
        %v362 = vrot.slane %v360, 5
        %v363 = vor.u32 %v359, %v362
        %v364 = vrot.slane %v363, 4
        %v366 = vshll.u32 %v339, 16
        %v368 = vrot.slane %v366, 5
        %v369 = vsel %vm281, %v364, %v368
        %v370 = vshrl.u32 %v339, 16
        %v372 = vrot.slane %v370, 4
        %v373 = vor.u32 %v372, %v368
        %v374 = vrot.slane %v373, 4
        %v376 = vshll.u32 %v340, 16
        %v378 = vrot.slane %v376, 5
        %v379 = vsel %vm281, %v374, %v378
        %v381 = vshrl.u32 %v341, 16
        %v383 = vrot.slane %v381, 4
        %v384 = vshll.u32 %v341, 16
        %v386 = vrot.slane %v384, 5
        %v387 = vor.u32 %v383, %v386
        %v388 = vrot.slane %v387, 4
        %v390 = vshll.u32 %v342, 16
        %v392 = vrot.slane %v390, 5
        %v393 = vsel %vm281, %v388, %v392
        %v394 = vshrl.u32 %v342, 16
        %v396 = vrot.slane %v394, 4
        %v397 = vor.u32 %v396, %v392
        %v398 = vrot.slane %v397, 4
        %v400 = vshll.u32 %v343, 16
        %v402 = vrot.slane %v400, 5
        %v403 = vsel %vm281, %v398, %v402
        %v405 = vshrl.u32 %v344, 16
        %v407 = vrot.slane %v405, 4
        %v408 = vshll.u32 %v344, 16
        %v410 = vrot.slane %v408, 5
        %v411 = vor.u32 %v407, %v410
        %v412 = vrot.slane %v411, 4
        %v414 = vshll.u32 %v345, 16
        %v416 = vrot.slane %v414, 5
        %v417 = vsel %vm281, %v412, %v416
        %v418 = vshrl.u32 %v345, 16
        %v420 = vrot.slane %v418, 4
        %v421 = vor.u32 %v420, %v416
        %v422 = vrot.slane %v421, 4
        %v424 = vshll.u32 %v346, 16
        %v426 = vrot.slane %v424, 5
        %v427 = vsel %vm281, %v422, %v426
        %v429 = vshrl.u32 %v347, 16
        %v431 = vrot.slane %v429, 4
        %v432 = vshll.u32 %v347, 16
        %v434 = vrot.slane %v432, 5
        %v435 = vor.u32 %v431, %v434
        %v436 = vrot.slane %v435, 4
        %v438 = vshll.u32 %v348, 16
        %v440 = vrot.slane %v438, 5
        %v441 = vsel %vm281, %v436, %v440
        %v442 = vshrl.u32 %v348, 16
        %v444 = vrot.slane %v442, 4
        %v445 = vor.u32 %v444, %v440
        %v446 = vrot.slane %v445, 4
        %v448 = vshll.u32 %v349, 16
        %v450 = vrot.slane %v448, 5
        %v451 = vsel %vm281, %v446, %v450
        %v453 = vshrl.u32 %v350, 16
        %v455 = vrot.slane %v453, 4
        %v456 = vshll.u32 %v350, 16
        %v458 = vrot.slane %v456, 5
        %v459 = vor.u32 %v455, %v458
        %v460 = vrot.slane %v459, 4
        %v462 = vshll.u32 %v351, 16
        %v464 = vrot.slane %v462, 5
        %v465 = vsel %vm281, %v460, %v464
        %v466 = vshrl.u32 %v351, 16
        %v468 = vrot.slane %v466, 4
        %v469 = vor.u32 %v468, %v464
        %v470 = vrot.slane %v469, 4
        %v472 = vshll.u32 %v352, 16
        %v474 = vrot.slane %v472, 5
        %v475 = vsel %vm281, %v470, %v474
        %v477 = vshrl.u32 %v353, 16
        %v479 = vrot.slane %v477, 4
        %v480 = vshll.u32 %v353, 16
        %v482 = vrot.slane %v480, 5
        %v483 = vor.u32 %v479, %v482
        %v484 = vrot.slane %v483, 4
        %v486 = vshll.u32 %v354, 16
        %v488 = vrot.slane %v486, 5
        %v489 = vsel %vm281, %v484, %v488
        %v490 = vshrl.u32 %v354, 16
        %v492 = vrot.slane %v490, 4
        %v493 = vor.u32 %v492, %v488
        %v494 = vrot.slane %v493, 4
        %v496 = vshll.u32 %v355, 16
        %v498 = vrot.slane %v496, 5
        %v499 = vsel %vm281, %v494, %v498
        %512 = vst [vmem:[#allocation3 + $0x34] sm:$0xf] %v369
        %513 = vst [vmem:[#allocation3 + $0x40] sm:$0xf] %v379
        %514 = vst [vmem:[#allocation3 + $0x4c] sm:$0xf] %v393
        %515 = vst [vmem:[#allocation3 + $0x58] sm:$0xf] %v403
        %516 = vst [vmem:[#allocation3 + $0x64] sm:$0xf] %v417
        %517 = vst [vmem:[#allocation3 + $0x70] sm:$0xf] %v427
        %518 = vst [vmem:[#allocation3 + $0x7c] sm:$0xf] %v441
        %519 = vst [vmem:[#allocation3 + $0x88] sm:$0xf] %v451
        %520 = vst [vmem:[#allocation3 + $0x94] sm:$0xf] %v465
        %521 = vst [vmem:[#allocation3 + $0xa0] sm:$0xf] %v475
        %522 = vst [vmem:[#allocation3 + $0xac] sm:$0xf] %v489
        %523 = vst [vmem:[#allocation3 + $0xb8] sm:$0xf] %v499
        %v524 = vld [vmem:[#allocation2] sm:$0xe]
        %v525 = vld [vmem:[#allocation2 + $0x4] sm:$0xf]
        %v526 = vld [vmem:[#allocation2 + $0x8] sm:$0x1]
        %v527 = vld [vmem:[#allocation2 + $0xc] sm:$0xe]
        %v528 = vld [vmem:[#allocation2 + $0x10] sm:$0xf]
        %v529 = vld [vmem:[#allocation2 + $0x14] sm:$0x1]
        %vm536 = vcmask 1042432
        %vm537 = vcmask 1046532
        %vm538 = vmor %vm536, %vm537
        %v539 = vrot.slane %v524, 5
        %v540 = vrot.slane %v539, 4
        %v541 = vrot.slane %v525, 5
        %v542 = vsel %vm538, %v540, %v541
        %v543 = vrot.slane %v541, 4
        %v544 = vrot.slane %v526, 5
        %v545 = vsel %vm538, %v543, %v544
        %v546 = vrot.slane %v527, 5
        %v547 = vrot.slane %v546, 4
        %v548 = vrot.slane %v528, 5
        %v549 = vsel %vm538, %v547, %v548
        %v550 = vrot.slane %v548, 4
        %v551 = vrot.slane %v529, 5
        %v552 = vsel %vm538, %v550, %v551
        %557 = vst [vmem:[#allocation3 + $0x8] sm:$0xf] %v542
        %558 = vst [vmem:[#allocation3 + $0x14] sm:$0xf] %v545
        %559 = vst [vmem:[#allocation3 + $0x20] sm:$0xf] %v549
        %560 = vst [vmem:[#allocation3 + $0x2c] sm:$0xf] %v552
        %v561 = vld [vmem:[%s227] sm:$0xe]
        %v562 = vld [vmem:[%s227 + $0x4] sm:$0xf]
        %v563 = vld [vmem:[%s227 + $0x8] sm:$0x1]
        %v564 = vld [vmem:[%s227 + $0xc] sm:$0xe]
        %v565 = vld [vmem:[%s227 + $0x10] sm:$0xf]
        %v566 = vld [vmem:[%s227 + $0x14] sm:$0x1]
        %v567 = vld [vmem:[%s227 + $0x18] sm:$0xe]
        %v568 = vld [vmem:[%s227 + $0x1c] sm:$0xf]
        %v569 = vld [vmem:[%s227 + $0x20] sm:$0x1]
        %v570 = vld [vmem:[%s227 + $0x24] sm:$0xe]
        %v571 = vld [vmem:[%s227 + $0x28] sm:$0xf]
        %v572 = vld [vmem:[%s227 + $0x2c] sm:$0x1]
        %v573 = vld [vmem:[%s227 + $0x30] sm:$0xe]
        %v574 = vld [vmem:[%s227 + $0x34] sm:$0xf]
        %v575 = vld [vmem:[%s227 + $0x38] sm:$0x1]
        %v576 = vld [vmem:[%s227 + $0x3c] sm:$0xe]
        %v577 = vld [vmem:[%s227 + $0x40] sm:$0xf]
        %v578 = vld [vmem:[%s227 + $0x44] sm:$0x1]
        %v597 = vrot.slane %v561, 5
        %v598 = vrot.slane %v597, 4
        %v599 = vrot.slane %v562, 5
        %v600 = vsel %vm538, %v598, %v599
        %v601 = vrot.slane %v599, 4
        %v602 = vrot.slane %v563, 5
        %v603 = vsel %vm538, %v601, %v602
        %v604 = vrot.slane %v564, 5
        %v605 = vrot.slane %v604, 4
        %v606 = vrot.slane %v565, 5
        %v607 = vsel %vm538, %v605, %v606
        %v608 = vrot.slane %v606, 4
        %v609 = vrot.slane %v566, 5
        %v610 = vsel %vm538, %v608, %v609
        %v611 = vrot.slane %v567, 5
        %v612 = vrot.slane %v611, 4
        %v613 = vrot.slane %v568, 5
        %v614 = vsel %vm538, %v612, %v613
        %v615 = vrot.slane %v613, 4
        %v616 = vrot.slane %v569, 5
        %v617 = vsel %vm538, %v615, %v616
        %v618 = vrot.slane %v570, 5
        %v619 = vrot.slane %v618, 4
        %v620 = vrot.slane %v571, 5
        %v621 = vsel %vm538, %v619, %v620
        %v622 = vrot.slane %v620, 4
        %v623 = vrot.slane %v572, 5
        %v624 = vsel %vm538, %v622, %v623
        %v625 = vrot.slane %v573, 5
        %v626 = vrot.slane %v625, 4
        %v627 = vrot.slane %v574, 5
        %v628 = vsel %vm538, %v626, %v627
        %v629 = vrot.slane %v627, 4
        %v630 = vrot.slane %v575, 5
        %v631 = vsel %vm538, %v629, %v630
        %v632 = vrot.slane %v576, 5
        %v633 = vrot.slane %v632, 4
        %v634 = vrot.slane %v577, 5
        %v635 = vsel %vm538, %v633, %v634
        %v636 = vrot.slane %v634, 4
        %v637 = vrot.slane %v578, 5
        %v638 = vsel %vm538, %v636, %v637
        %651 = vst [vmem:[#allocation3 + $0x38] sm:$0xf] %v600
        %652 = vst [vmem:[#allocation3 + $0x44] sm:$0xf] %v603
        %653 = vst [vmem:[#allocation3 + $0x50] sm:$0xf] %v607
        %654 = vst [vmem:[#allocation3 + $0x5c] sm:$0xf] %v610
        %655 = vst [vmem:[#allocation3 + $0x68] sm:$0xf] %v614
        %656 = vst [vmem:[#allocation3 + $0x74] sm:$0xf] %v617
        %657 = vst [vmem:[#allocation3 + $0x80] sm:$0xf] %v621
        %658 = vst [vmem:[#allocation3 + $0x8c] sm:$0xf] %v624
        %659 = vst [vmem:[#allocation3 + $0x98] sm:$0xf] %v628
        %660 = vst [vmem:[#allocation3 + $0xa4] sm:$0xf] %v631
        %661 = vst [vmem:[#allocation3 + $0xb0] sm:$0xf] %v635
        %662 = vst [vmem:[#allocation3 + $0xbc] sm:$0xf] %v638
        %s663 = scalar_lea.vmem %s227, 48
        %v664 = vld [vmem:[%s663] sm:$0xf]
        %v665 = vld [vmem:[%s663 + $0x4] sm:$0xf]
        %v666 = vld [vmem:[%s663 + $0x8] sm:$0x1]
        %v667 = vld [vmem:[%s663 + $0xc] sm:$0xf]
        %v668 = vld [vmem:[%s663 + $0x10] sm:$0xf]
        %v669 = vld [vmem:[%s663 + $0x14] sm:$0x1]
        %670 = vst [vmem:[#allocation2] sm:$0xf] %v664
        %671 = vst [vmem:[#allocation2 + $0x4] sm:$0xf] %v665
        %672 = vst [vmem:[#allocation2 + $0x8] sm:$0x1] %v666
        %673 = vst [vmem:[#allocation2 + $0xc] sm:$0xf] %v667
        %674 = vst [vmem:[#allocation2 + $0x10] sm:$0xf] %v668
        %675 = vst [vmem:[#allocation2 + $0x14] sm:$0x1] %v669
        %v676 = vld [vmem:[#allocation3] sm:$0xff]
        %v677 = vld [vmem:[#allocation3 + $0x8] sm:$0xf]
        %v678 = vld [vmem:[#allocation3 + $0xc] sm:$0xff]
        %v679 = vld [vmem:[#allocation3 + $0x14] sm:$0xf]
        %v680 = vld [vmem:[#allocation3 + $0x18] sm:$0xff]
        %v681 = vld [vmem:[#allocation3 + $0x20] sm:$0xf]
        %v682 = vld [vmem:[#allocation3 + $0x24] sm:$0xff]
        %v683 = vld [vmem:[#allocation3 + $0x2c] sm:$0xf]
        %v684 = vld [vmem:[#allocation3 + $0x30] sm:$0xff]
        %v685 = vld [vmem:[#allocation3 + $0x38] sm:$0xf]
        %v686 = vld [vmem:[#allocation3 + $0x3c] sm:$0xff]
        %v687 = vld [vmem:[#allocation3 + $0x44] sm:$0xf]
        %v688 = vld [vmem:[#allocation3 + $0x48] sm:$0xff]
        %v689 = vld [vmem:[#allocation3 + $0x50] sm:$0xf]
        %v690 = vld [vmem:[#allocation3 + $0x54] sm:$0xff]
        %v691 = vld [vmem:[#allocation3 + $0x5c] sm:$0xf]
        %v692 = vld [vmem:[#allocation3 + $0x60] sm:$0xff]
        %v693 = vld [vmem:[#allocation3 + $0x68] sm:$0xf]
        %v694 = vld [vmem:[#allocation3 + $0x6c] sm:$0xff]
        %v695 = vld [vmem:[#allocation3 + $0x74] sm:$0xf]
        %v696 = vld [vmem:[#allocation3 + $0x78] sm:$0xff]
        %v697 = vld [vmem:[#allocation3 + $0x80] sm:$0xf]
        %v698 = vld [vmem:[#allocation3 + $0x84] sm:$0xff]
        %v699 = vld [vmem:[#allocation3 + $0x8c] sm:$0xf]
        %v700 = vld [vmem:[%s1] sm:$0xf]
        %v701 = vld [vmem:[%s1 + $0x4] sm:$0xf]
        %v702 = vld [vmem:[%s1 + $0x8] sm:$0xf]
        %v703 = vld [vmem:[%s1 + $0xc] sm:$0xf]
        %v704 = vld [vmem:[%s1 + $0x10] sm:$0xf]
        %v705 = vld [vmem:[%s1 + $0x14] sm:$0xf]
        %v706 = vld [vmem:[%s1 + $0x18] sm:$0xf]
        %v707 = vld [vmem:[%s1 + $0x1c] sm:$0xf]
        %v708 = vld [vmem:[%s1 + $0x20] sm:$0xf]
        %v709 = vld [vmem:[%s1 + $0x24] sm:$0xf]
        %v710 = vld [vmem:[%s1 + $0x28] sm:$0xf]
        %v711 = vld [vmem:[%s1 + $0x2c] sm:$0xf]
        %v712 = vld [vmem:[%s1 + $0x30] sm:$0xf]
        %v713 = vld [vmem:[%s1 + $0x34] sm:$0xf]
        %v714 = vld [vmem:[%s1 + $0x38] sm:$0xf]
        %v715 = vld [vmem:[%s1 + $0x3c] sm:$0xf]
        %v716 = vld [vmem:[%s1 + $0x40] sm:$0xf]
        %v717 = vld [vmem:[%s1 + $0x44] sm:$0xf]
        %v718 = vld [vmem:[%s1 + $0x48] sm:$0xf]
        %v719 = vld [vmem:[%s1 + $0x4c] sm:$0xf]
        %v720 = vld [vmem:[%s1 + $0x50] sm:$0xf]
        %v721 = vld [vmem:[%s1 + $0x54] sm:$0xf]
        %v722 = vld [vmem:[%s1 + $0x58] sm:$0xf]
        %v723 = vld [vmem:[%s1 + $0x5c] sm:$0xf]
        %v724 = vld [vmem:[%s1 + $0x60] sm:$0xf]
        %v725 = vld [vmem:[%s1 + $0x64] sm:$0xf]
        %v726 = vld [vmem:[%s1 + $0x68] sm:$0xf]
        %v727 = vld [vmem:[%s1 + $0x6c] sm:$0xf]
        %v728 = vld [vmem:[%s1 + $0x70] sm:$0xf]
        %v729 = vld [vmem:[%s1 + $0x74] sm:$0xf]
        %v730 = vld [vmem:[%s1 + $0x78] sm:$0xf]
        %v731 = vld [vmem:[%s1 + $0x7c] sm:$0xf]
        %v732 = vld [vmem:[%s1 + $0x80] sm:$0xf]
        %v733 = vld [vmem:[%s1 + $0x84] sm:$0xf]
        %v734 = vld [vmem:[%s1 + $0x88] sm:$0xf]
        %v735 = vld [vmem:[%s1 + $0x8c] sm:$0xf]
        %v736 = vld [vmem:[%s1 + $0x90] sm:$0xf]
        %v737 = vld [vmem:[%s1 + $0x94] sm:$0xf]
        %v738 = vld [vmem:[%s1 + $0x98] sm:$0xf]
        %v739 = vld [vmem:[%s1 + $0x9c] sm:$0xf]
        %v740 = vld [vmem:[%s1 + $0xa0] sm:$0xf]
        %v741 = vld [vmem:[%s1 + $0xa4] sm:$0xf]
        %v742 = vld [vmem:[%s1 + $0xa8] sm:$0xf]
        %v743 = vld [vmem:[%s1 + $0xac] sm:$0xf]
        %v744 = vld [vmem:[%s1 + $0xb0] sm:$0xf]
        %v745 = vld [vmem:[%s1 + $0xb4] sm:$0xf]
        %v746 = vld [vmem:[%s1 + $0xb8] sm:$0xf]
        %v747 = vld [vmem:[%s1 + $0xbc] sm:$0xf]
        %v748 = vld [vmem:[#allocation3 + $0x90] sm:$0xff]
        %v749 = vld [vmem:[#allocation3 + $0x98] sm:$0xf]
        %v750 = vld [vmem:[#allocation3 + $0x9c] sm:$0xff]
        %v751 = vld [vmem:[#allocation3 + $0xa4] sm:$0xf]
        %s752 = scalar_lea.vmem %s1, 192
        %v753 = vld [vmem:[%s752] sm:$0xf]
        %v754 = vld [vmem:[%s752 + $0x4] sm:$0xf]
        %v755 = vld [vmem:[%s752 + $0x8] sm:$0xf]
        %v756 = vld [vmem:[%s752 + $0xc] sm:$0xf]
        %v757 = vld [vmem:[%s752 + $0x10] sm:$0xf]
        %v758 = vld [vmem:[%s752 + $0x14] sm:$0xf]
        %v759 = vld [vmem:[%s752 + $0x18] sm:$0xf]
        %v760 = vld [vmem:[%s752 + $0x1c] sm:$0xf]
        %v761 = vld [vmem:[%s752 + $0x20] sm:$0xf]
        %v762 = vld [vmem:[%s752 + $0x24] sm:$0xf]
        %v763 = vld [vmem:[%s752 + $0x28] sm:$0xf]
        %v764 = vld [vmem:[%s752 + $0x2c] sm:$0xf]
        %v765 = vld [vmem:[%s752 + $0x30] sm:$0xf]
        %v766 = vld [vmem:[%s752 + $0x34] sm:$0xf]
        %v767 = vld [vmem:[%s752 + $0x38] sm:$0xf]
        %v768 = vld [vmem:[%s752 + $0x3c] sm:$0xf]
        %v769 = vld [vmem:[%s752 + $0x40] sm:$0xf]
        %v770 = vld [vmem:[%s752 + $0x44] sm:$0xf]
        %v771 = vld [vmem:[%s752 + $0x48] sm:$0xf]
        %v772 = vld [vmem:[%s752 + $0x4c] sm:$0xf]
        %v773 = vld [vmem:[%s752 + $0x50] sm:$0xf]
        %v774 = vld [vmem:[%s752 + $0x54] sm:$0xf]
        %v775 = vld [vmem:[%s752 + $0x58] sm:$0xf]
        %v776 = vld [vmem:[%s752 + $0x5c] sm:$0xf]
        %v777 = vld [vmem:[%s752 + $0x60] sm:$0xf]
        %v778 = vld [vmem:[%s752 + $0x64] sm:$0xf]
        %v779 = vld [vmem:[%s752 + $0x68] sm:$0xf]
        %v780 = vld [vmem:[%s752 + $0x6c] sm:$0xf]
        %v781 = vld [vmem:[%s752 + $0x70] sm:$0xf]
        %v782 = vld [vmem:[%s752 + $0x74] sm:$0xf]
        %v783 = vld [vmem:[%s752 + $0x78] sm:$0xf]
        %v784 = vld [vmem:[%s752 + $0x7c] sm:$0xf]
        %v785 = vld [vmem:[%s752 + $0x80] sm:$0xf]
        %v786 = vld [vmem:[%s752 + $0x84] sm:$0xf]
        %v787 = vld [vmem:[%s752 + $0x88] sm:$0xf]
        %v788 = vld [vmem:[%s752 + $0x8c] sm:$0xf]
        %v789 = vld [vmem:[%s752 + $0x90] sm:$0xf]
        %v790 = vld [vmem:[%s752 + $0x94] sm:$0xf]
        %v791 = vld [vmem:[%s752 + $0x98] sm:$0xf]
        %v792 = vld [vmem:[%s752 + $0x9c] sm:$0xf]
        %v793 = vld [vmem:[%s752 + $0xa0] sm:$0xf]
        %v794 = vld [vmem:[%s752 + $0xa4] sm:$0xf]
        %v795 = vld [vmem:[%s752 + $0xa8] sm:$0xf]
        %v796 = vld [vmem:[%s752 + $0xac] sm:$0xf]
        %v797 = vld [vmem:[%s752 + $0xb0] sm:$0xf]
        %v798 = vld [vmem:[%s752 + $0xb4] sm:$0xf]
        %v799 = vld [vmem:[%s752 + $0xb8] sm:$0xf]
        %v800 = vld [vmem:[%s752 + $0xbc] sm:$0xf]
        %v825 = vunpack.c.l.b16 %v680
        %v826 = vunpack.c.h.b16 %v680
        %v827 = vunpack.c.l.b16 %v681
        %v828 = vunpack.c.l.b16 %v682
        %v829 = vunpack.c.h.b16 %v682
        %v830 = vunpack.c.l.b16 %v683
        %v831 = vunpack.c.l.b16 %v684
        %v832 = vunpack.c.h.b16 %v684
        %v833 = vunpack.c.l.b16 %v685
        %v834 = vunpack.c.l.b16 %v686
        %v835 = vunpack.c.h.b16 %v686
        %v836 = vunpack.c.l.b16 %v687
        %v837 = vunpack.c.l.b16 %v688
        %v838 = vunpack.c.h.b16 %v688
        %v839 = vunpack.c.l.b16 %v689
        %v840 = vunpack.c.l.b16 %v690
        %v841 = vunpack.c.h.b16 %v690
        %v842 = vunpack.c.l.b16 %v691
        %v843 = vunpack.c.l.b16 %v692
        %v844 = vunpack.c.h.b16 %v692
        %v845 = vunpack.c.l.b16 %v693
        %v846 = vunpack.c.l.b16 %v694
        %v847 = vunpack.c.h.b16 %v694
        %v848 = vunpack.c.l.b16 %v695
        %v849 = vunpack.c.l.b16 %v696
        %v850 = vunpack.c.h.b16 %v696
        %v851 = vunpack.c.l.b16 %v697
        %v852 = vunpack.c.l.b16 %v698
        %v853 = vunpack.c.h.b16 %v698
        %v854 = vunpack.c.l.b16 %v699
        %v855 = vunpack.c.l.b16 %v748
        %v856 = vunpack.c.h.b16 %v748
        %v857 = vunpack.c.l.b16 %v749
        %v858 = vunpack.c.l.b16 %v750
        %v859 = vunpack.c.h.b16 %v750
        %v860 = vunpack.c.l.b16 %v751
        %v861 = vpack.c.b16 %v828, %v825
        %v862 = vpack.c.b16 %v829, %v826
        %v863 = vpack.c.b16 %v830, %v827
        %v864 = vpack.c.b16 %v834, %v831
        %v865 = vpack.c.b16 %v835, %v832
        %v866 = vpack.c.b16 %v836, %v833
        %v867 = vpack.c.b16 %v840, %v837
        %v868 = vpack.c.b16 %v841, %v838
        %v869 = vpack.c.b16 %v842, %v839
        %v870 = vpack.c.b16 %v846, %v843
        %v871 = vpack.c.b16 %v847, %v844
        %v872 = vpack.c.b16 %v848, %v845
        %v873 = vpack.c.b16 %v852, %v849
        %v874 = vpack.c.b16 %v853, %v850
        %v875 = vpack.c.b16 %v854, %v851
        %v876 = vpack.c.b16 %v858, %v855
        %v877 = vpack.c.b16 %v859, %v856
        %v878 = vpack.c.b16 %v860, %v857
        %v945 = vunpack.c.l.b16 %v753
        %v946 = vunpack.c.l.b16 %v754
        %v947 = vunpack.c.l.b16 %v755
        %v948 = vunpack.c.l.b16 %v756
        %v949 = vunpack.c.l.b16 %v757
        %v950 = vunpack.c.l.b16 %v758
        %v951 = vunpack.c.l.b16 %v759
        %v952 = vunpack.c.l.b16 %v760
        %v953 = vunpack.c.l.b16 %v761
        %v954 = vunpack.c.l.b16 %v762
        %v955 = vunpack.c.l.b16 %v763
        %v956 = vunpack.c.l.b16 %v764
        %v957 = vunpack.c.l.b16 %v765
        %v958 = vunpack.c.l.b16 %v766
        %v959 = vunpack.c.l.b16 %v767
        %v960 = vunpack.c.l.b16 %v768
        %v961 = vunpack.c.l.b16 %v769
        %v962 = vunpack.c.l.b16 %v770
        %v963 = vunpack.c.l.b16 %v771
        %v964 = vunpack.c.l.b16 %v772
        %v965 = vunpack.c.l.b16 %v773
        %v966 = vunpack.c.l.b16 %v774
        %v967 = vunpack.c.l.b16 %v775
        %v968 = vunpack.c.l.b16 %v776
        %v969 = vunpack.c.l.b16 %v777
        %v970 = vunpack.c.l.b16 %v778
        %v971 = vunpack.c.l.b16 %v779
        %v972 = vunpack.c.l.b16 %v780
        %v973 = vunpack.c.l.b16 %v781
        %v974 = vunpack.c.l.b16 %v782
        %v975 = vunpack.c.l.b16 %v783
        %v976 = vunpack.c.l.b16 %v784
        %v977 = vunpack.c.l.b16 %v785
        %v978 = vunpack.c.l.b16 %v786
        %v979 = vunpack.c.l.b16 %v787
        %v980 = vunpack.c.l.b16 %v788
        %v981 = vunpack.c.l.b16 %v789
        %v982 = vunpack.c.l.b16 %v790
        %v983 = vunpack.c.l.b16 %v791
        %v984 = vunpack.c.l.b16 %v792
        %v985 = vunpack.c.l.b16 %v793
        %v986 = vunpack.c.l.b16 %v794
        %v987 = vunpack.c.l.b16 %v795
        %v988 = vunpack.c.l.b16 %v796
        %v989 = vunpack.c.l.b16 %v797
        %v990 = vunpack.c.l.b16 %v798
        %v991 = vunpack.c.l.b16 %v799
        %v992 = vunpack.c.l.b16 %v800
        %v993 = vpack.c.b16 %v946, %v945
        %v994 = vpack.c.b16 %v948, %v947
        %v995 = vpack.c.b16 %v950, %v949
        %v996 = vpack.c.b16 %v952, %v951
        %v997 = vpack.c.b16 %v954, %v953
        %v998 = vpack.c.b16 %v956, %v955
        %v999 = vpack.c.b16 %v958, %v957
        %v1000 = vpack.c.b16 %v960, %v959
        %v1001 = vpack.c.b16 %v962, %v961
        %v1002 = vpack.c.b16 %v964, %v963
        %v1003 = vpack.c.b16 %v966, %v965
        %v1004 = vpack.c.b16 %v968, %v967
        %v1005 = vpack.c.b16 %v970, %v969
        %v1006 = vpack.c.b16 %v972, %v971
        %v1007 = vpack.c.b16 %v974, %v973
        %v1008 = vpack.c.b16 %v976, %v975
        %v1009 = vpack.c.b16 %v978, %v977
        %v1010 = vpack.c.b16 %v980, %v979
        %v1011 = vpack.c.b16 %v982, %v981
        %v1012 = vpack.c.b16 %v984, %v983
        %v1013 = vpack.c.b16 %v986, %v985
        %v1014 = vpack.c.b16 %v988, %v987
        %v1015 = vpack.c.b16 %v990, %v989
        %v1016 = vpack.c.b16 %v992, %v991
        %1041 = vmatprep.subr.bf16.mxu0 0
        %1042 = vmatpush1.bf16.msra.mxu0 %v1000
        %1043 = vmatprep.subr.bf16.mxu0 0
        %1044 = vmatpush1.bf16.msra.mxu0 %v999
        %1045 = vmatprep.subr.bf16.mxu0 0
        %1046 = vmatpush1.bf16.msra.mxu0 %v998
        %1047 = vmatprep.subr.bf16.mxu0 0
        %1048 = vmatpush1.bf16.msra.mxu0 %v997
        %1049 = vmatprep.subr.bf16.mxu0 0
        %1050 = vmatpush1.bf16.msra.mxu0 %v996
        %1051 = vmatprep.subr.bf16.mxu0 0
        %1052 = vmatpush1.bf16.msra.mxu0 %v995
        %1053 = vmatprep.subr.bf16.mxu0 0
        %1054 = vmatpush1.bf16.msra.mxu0 %v994
        %1055 = vmatprep.subr.bf16.mxu0 0
        %1056 = vmatpush1.bf16.msra.mxu0 %v993
        %1057 = vmatprep.subr.bf16.mxu0 0
        %1058 = vmatpush2.bf16.msra.mxu0 %v1008
        %1059 = vmatprep.subr.bf16.mxu0 0
        %1060 = vmatpush2.bf16.msra.mxu0 %v1007
        %1061 = vmatprep.subr.bf16.mxu0 0
        %1062 = vmatpush2.bf16.msra.mxu0 %v1006
        %1063 = vmatprep.subr.bf16.mxu0 0
        %1064 = vmatpush2.bf16.msra.mxu0 %v1005
        %1065 = vmatprep.subr.bf16.mxu0 0
        %1066 = vmatpush2.bf16.msra.mxu0 %v1004
        %1067 = vmatprep.subr.bf16.mxu0 0
        %1068 = vmatpush2.bf16.msra.mxu0 %v1003
        %1069 = vmatprep.subr.bf16.mxu0 0
        %1070 = vmatpush2.bf16.msra.mxu0 %v1002
        %1071 = vmatprep.subr.bf16.mxu0 0
        %1072 = vmatpush2.bf16.msra.mxu0 %v1001
        %1073 = vmatprep.mubr.bf16.mxu0 %v862
        %1074 = vmatmul.mubr.bf16.gmra.mxu0 %v861
        %v1075 = vpop.f32.mrf.mxu0
        %v1076 = vadd.f32 0.0, %v1075
        %v1077 = vpop.f32.mrf.mxu0
        %v1078 = vpop.f32.mrf.mxu0
        %v1079 = vadd.f32 0.0, %v1078
        %v1080 = vpop.f32.mrf.mxu0
        %1081 = vmatprep.mubr.bf16.mxu0 %v865
        %1082 = vmatmul.mubr.bf16.gmra.mxu0 %v864
        %v1083 = vpop.f32.mrf.mxu0
        %v1084 = vadd.f32 0.0, %v1083
        %v1085 = vpop.f32.mrf.mxu0
        %v1086 = vpop.f32.mrf.mxu0
        %v1087 = vadd.f32 0.0, %v1086
        %v1088 = vpop.f32.mrf.mxu0
        %1089 = vmatprep.mubr.bf16.mxu0 %v868
        %1090 = vmatmul.mubr.bf16.gmra.mxu0 %v867
        %v1091 = vpop.f32.mrf.mxu0
        %v1092 = vadd.f32 0.0, %v1091
        %v1093 = vpop.f32.mrf.mxu0
        %v1094 = vpop.f32.mrf.mxu0
        %v1095 = vadd.f32 0.0, %v1094
        %v1096 = vpop.f32.mrf.mxu0
        %1097 = vmatprep.mubr.bf16.mxu0 %v871
        %1098 = vmatmul.mubr.bf16.gmra.mxu0 %v870
        %v1099 = vpop.f32.mrf.mxu0
        %v1100 = vadd.f32 0.0, %v1099
        %v1101 = vpop.f32.mrf.mxu0
        %v1102 = vpop.f32.mrf.mxu0
        %v1103 = vadd.f32 0.0, %v1102
        %v1104 = vpop.f32.mrf.mxu0
        %1105 = vmatprep.mubr.bf16.mxu0 %v874
        %1106 = vmatmul.mubr.bf16.gmra.mxu0 %v873
        %v1107 = vpop.f32.mrf.mxu0
        %v1108 = vadd.f32 0.0, %v1107
        %v1109 = vpop.f32.mrf.mxu0
        %v1110 = vpop.f32.mrf.mxu0
        %v1111 = vadd.f32 0.0, %v1110
        %v1112 = vpop.f32.mrf.mxu0
        %1113 = vmatprep.mubr.bf16.mxu0 %v877
        %1114 = vmatmul.mubr.bf16.gmra.mxu0 %v876
        %v1115 = vpop.f32.mrf.mxu0
        %v1116 = vadd.f32 0.0, %v1115
        %v1117 = vpop.f32.mrf.mxu0
        %v1118 = vpop.f32.mrf.mxu0
        %v1119 = vadd.f32 0.0, %v1118
        %v1120 = vpop.f32.mrf.mxu0
        %1121 = vdwg.mxu0
        %1122 = vmatprep.subr.bf16.mxu0 0
        %1123 = vmatpush1.bf16.msra.mxu0 %v1016
        %1124 = vmatprep.subr.bf16.mxu0 0
        %1125 = vmatpush1.bf16.msra.mxu0 %v1015
        %1126 = vmatprep.subr.bf16.mxu0 0
        %1127 = vmatpush1.bf16.msra.mxu0 %v1014
        %1128 = vmatprep.subr.bf16.mxu0 0
        %1129 = vmatpush1.bf16.msra.mxu0 %v1013
        %1130 = vmatprep.subr.bf16.mxu0 0
        %1131 = vmatpush1.bf16.msra.mxu0 %v1012
        %1132 = vmatprep.subr.bf16.mxu0 0
        %1133 = vmatpush1.bf16.msra.mxu0 %v1011
        %1134 = vmatprep.subr.bf16.mxu0 0
        %1135 = vmatpush1.bf16.msra.mxu0 %v1010
        %1136 = vmatprep.subr.bf16.mxu0 0
        %1137 = vmatpush1.bf16.msra.mxu0 %v1009
        %1138 = vmatprep.subr.bf16.mxu0 0
        %1139 = vmatpush2.bf16.msra.mxu0 0
        %1140 = vmatprep.subr.bf16.mxu0 0
        %1141 = vmatpush2.bf16.msra.mxu0 0
        %1142 = vmatprep.subr.bf16.mxu0 0
        %1143 = vmatpush2.bf16.msra.mxu0 0
        %1144 = vmatprep.subr.bf16.mxu0 0
        %1145 = vmatpush2.bf16.msra.mxu0 0
        %1146 = vmatprep.subr.bf16.mxu0 0
        %1147 = vmatpush2.bf16.msra.mxu0 0
        %1148 = vmatprep.subr.bf16.mxu0 0
        %1149 = vmatpush2.bf16.msra.mxu0 0
        %1150 = vmatprep.subr.bf16.mxu0 0
        %1151 = vmatpush2.bf16.msra.mxu0 0
        %1152 = vmatprep.subr.bf16.mxu0 0
        %1153 = vmatpush2.bf16.msra.mxu0 0
        %1154 = vmatprep.mubr.bf16.mxu0 0
        %1155 = vmatmul.mubr.bf16.gmra.mxu0 %v863
        %v1156 = vpop.f32.mrf.mxu0
        %v1157 = vadd.f32 %v1076, %v1156
        %v1158 = vpop.f32.mrf.mxu0
        %v1159 = vpop.f32.mrf.mxu0
        %v1160 = vadd.f32 %v1079, %v1159
        %v1161 = vpop.f32.mrf.mxu0
        %1162 = vmatprep.mubr.bf16.mxu0 0
        %1163 = vmatmul.mubr.bf16.gmra.mxu0 %v866
        %v1164 = vpop.f32.mrf.mxu0
        %v1165 = vadd.f32 %v1084, %v1164
        %v1166 = vpop.f32.mrf.mxu0
        %v1167 = vpop.f32.mrf.mxu0
        %v1168 = vadd.f32 %v1087, %v1167
        %v1169 = vpop.f32.mrf.mxu0
        %1170 = vmatprep.mubr.bf16.mxu0 0
        %1171 = vmatmul.mubr.bf16.gmra.mxu0 %v869
        %v1172 = vpop.f32.mrf.mxu0
        %v1173 = vadd.f32 %v1092, %v1172
        %v1174 = vpop.f32.mrf.mxu0
        %v1175 = vpop.f32.mrf.mxu0
        %v1176 = vadd.f32 %v1095, %v1175
        %v1177 = vpop.f32.mrf.mxu0
        %1178 = vmatprep.mubr.bf16.mxu0 0
        %1179 = vmatmul.mubr.bf16.gmra.mxu0 %v872
        %v1180 = vpop.f32.mrf.mxu0
        %v1181 = vadd.f32 %v1100, %v1180
        %v1182 = vpop.f32.mrf.mxu0
        %v1183 = vpop.f32.mrf.mxu0
        %v1184 = vadd.f32 %v1103, %v1183
        %v1185 = vpop.f32.mrf.mxu0
        %1186 = vmatprep.mubr.bf16.mxu0 0
        %1187 = vmatmul.mubr.bf16.gmra.mxu0 %v875
        %v1188 = vpop.f32.mrf.mxu0
        %v1189 = vadd.f32 %v1108, %v1188
        %v1190 = vpop.f32.mrf.mxu0
        %v1191 = vpop.f32.mrf.mxu0
        %v1192 = vadd.f32 %v1111, %v1191
        %v1193 = vpop.f32.mrf.mxu0
        %1194 = vmatprep.mubr.bf16.mxu0 0
        %1195 = vmatmul.mubr.bf16.gmra.mxu0 %v878
        %v1196 = vpop.f32.mrf.mxu0
        %v1197 = vadd.f32 %v1116, %v1196
        %v1198 = vpop.f32.mrf.mxu0
        %v1199 = vpop.f32.mrf.mxu0
        %v1200 = vadd.f32 %v1119, %v1199
        %v1201 = vpop.f32.mrf.mxu0
        %1202 = vdwg.mxu0
        %v1207 = vunpack.c.l.b16 %v676
        %v1208 = vunpack.c.h.b16 %v676
        %v1209 = vunpack.c.l.b16 %v677
        %v1210 = vunpack.c.l.b16 %v678
        %v1211 = vunpack.c.h.b16 %v678
        %v1212 = vunpack.c.l.b16 %v679
        %v1213 = vpack.c.b16 %v1210, %v1207
        %v1214 = vpack.c.b16 %v1211, %v1208
        %v1215 = vpack.c.b16 %v1212, %v1209
        %v1267 = vunpack.c.l.b16 %v700
        %v1268 = vunpack.c.l.b16 %v701
        %v1269 = vunpack.c.l.b16 %v702
        %v1270 = vunpack.c.l.b16 %v703
        %v1271 = vunpack.c.l.b16 %v704
        %v1272 = vunpack.c.l.b16 %v705
        %v1273 = vunpack.c.l.b16 %v706
        %v1274 = vunpack.c.l.b16 %v707
        %v1275 = vunpack.c.l.b16 %v708
        %v1276 = vunpack.c.l.b16 %v709
        %v1277 = vunpack.c.l.b16 %v710
        %v1278 = vunpack.c.l.b16 %v711
        %v1279 = vunpack.c.l.b16 %v712
        %v1280 = vunpack.c.l.b16 %v713
        %v1281 = vunpack.c.l.b16 %v714
        %v1282 = vunpack.c.l.b16 %v715
        %v1283 = vunpack.c.l.b16 %v716
        %v1284 = vunpack.c.l.b16 %v717
        %v1285 = vunpack.c.l.b16 %v718
        %v1286 = vunpack.c.l.b16 %v719
        %v1287 = vunpack.c.l.b16 %v720
        %v1288 = vunpack.c.l.b16 %v721
        %v1289 = vunpack.c.l.b16 %v722
        %v1290 = vunpack.c.l.b16 %v723
        %v1291 = vunpack.c.l.b16 %v724
        %v1292 = vunpack.c.l.b16 %v725
        %v1293 = vunpack.c.l.b16 %v726
        %v1294 = vunpack.c.l.b16 %v727
        %v1295 = vunpack.c.l.b16 %v728
        %v1296 = vunpack.c.l.b16 %v729
        %v1297 = vunpack.c.l.b16 %v730
        %v1298 = vunpack.c.l.b16 %v731
        %v1299 = vunpack.c.l.b16 %v732
        %v1300 = vunpack.c.l.b16 %v733
        %v1301 = vunpack.c.l.b16 %v734
        %v1302 = vunpack.c.l.b16 %v735
        %v1303 = vunpack.c.l.b16 %v736
        %v1304 = vunpack.c.l.b16 %v737
        %v1305 = vunpack.c.l.b16 %v738
        %v1306 = vunpack.c.l.b16 %v739
        %v1307 = vunpack.c.l.b16 %v740
        %v1308 = vunpack.c.l.b16 %v741
        %v1309 = vunpack.c.l.b16 %v742
        %v1310 = vunpack.c.l.b16 %v743
        %v1311 = vunpack.c.l.b16 %v744
        %v1312 = vunpack.c.l.b16 %v745
        %v1313 = vunpack.c.l.b16 %v746
        %v1314 = vunpack.c.l.b16 %v747
        %v1315 = vpack.c.b16 %v1268, %v1267
        %v1316 = vpack.c.b16 %v1270, %v1269
        %v1317 = vpack.c.b16 %v1272, %v1271
        %v1318 = vpack.c.b16 %v1274, %v1273
        %v1319 = vpack.c.b16 %v1276, %v1275
        %v1320 = vpack.c.b16 %v1278, %v1277
        %v1321 = vpack.c.b16 %v1280, %v1279
        %v1322 = vpack.c.b16 %v1282, %v1281
        %v1323 = vpack.c.b16 %v1284, %v1283
        %v1324 = vpack.c.b16 %v1286, %v1285
        %v1325 = vpack.c.b16 %v1288, %v1287
        %v1326 = vpack.c.b16 %v1290, %v1289
        %v1327 = vpack.c.b16 %v1292, %v1291
        %v1328 = vpack.c.b16 %v1294, %v1293
        %v1329 = vpack.c.b16 %v1296, %v1295
        %v1330 = vpack.c.b16 %v1298, %v1297
        %v1331 = vpack.c.b16 %v1300, %v1299
        %v1332 = vpack.c.b16 %v1302, %v1301
        %v1333 = vpack.c.b16 %v1304, %v1303
        %v1334 = vpack.c.b16 %v1306, %v1305
        %v1335 = vpack.c.b16 %v1308, %v1307
        %v1336 = vpack.c.b16 %v1310, %v1309
        %v1337 = vpack.c.b16 %v1312, %v1311
        %v1338 = vpack.c.b16 %v1314, %v1313
        %1363 = vmatprep.subr.bf16.mxu0 0
        %1364 = vmatpush1.bf16.msra.mxu0 %v1322
        %1365 = vmatprep.subr.bf16.mxu0 0
        %1366 = vmatpush1.bf16.msra.mxu0 %v1321
        %1367 = vmatprep.subr.bf16.mxu0 0
        %1368 = vmatpush1.bf16.msra.mxu0 %v1320
        %1369 = vmatprep.subr.bf16.mxu0 0
        %1370 = vmatpush1.bf16.msra.mxu0 %v1319
        %1371 = vmatprep.subr.bf16.mxu0 0
        %1372 = vmatpush1.bf16.msra.mxu0 %v1318
        %1373 = vmatprep.subr.bf16.mxu0 0
        %1374 = vmatpush1.bf16.msra.mxu0 %v1317
        %1375 = vmatprep.subr.bf16.mxu0 0
        %1376 = vmatpush1.bf16.msra.mxu0 %v1316
        %1377 = vmatprep.subr.bf16.mxu0 0
        %1378 = vmatpush1.bf16.msra.mxu0 %v1315
        %1379 = vmatprep.subr.bf16.mxu0 0
        %1380 = vmatpush2.bf16.msra.mxu0 %v1330
        %1381 = vmatprep.subr.bf16.mxu0 0
        %1382 = vmatpush2.bf16.msra.mxu0 %v1329
        %1383 = vmatprep.subr.bf16.mxu0 0
        %1384 = vmatpush2.bf16.msra.mxu0 %v1328
        %1385 = vmatprep.subr.bf16.mxu0 0
        %1386 = vmatpush2.bf16.msra.mxu0 %v1327
        %1387 = vmatprep.subr.bf16.mxu0 0
        %1388 = vmatpush2.bf16.msra.mxu0 %v1326
        %1389 = vmatprep.subr.bf16.mxu0 0
        %1390 = vmatpush2.bf16.msra.mxu0 %v1325
        %1391 = vmatprep.subr.bf16.mxu0 0
        %1392 = vmatpush2.bf16.msra.mxu0 %v1324
        %1393 = vmatprep.subr.bf16.mxu0 0
        %1394 = vmatpush2.bf16.msra.mxu0 %v1323
        %1395 = vmatprep.mubr.bf16.mxu0 %v1214
        %1396 = vmatmul.mubr.bf16.gmra.mxu0 %v1213
        %v1397 = vpop.f32.mrf.mxu0
        %v1398 = vadd.f32 %v1157, %v1397
        %v1399 = vpop.f32.mrf.mxu0
        %v1400 = vpop.f32.mrf.mxu0
        %v1401 = vadd.f32 %v1160, %v1400
        %v1402 = vpop.f32.mrf.mxu0
        %1403 = vmatprep.mubr.bf16.mxu0 %v862
        %1404 = vmatmul.mubr.bf16.gmra.mxu0 %v861
        %v1405 = vpop.f32.mrf.mxu0
        %v1406 = vadd.f32 %v1165, %v1405
        %v1407 = vpop.f32.mrf.mxu0
        %v1408 = vpop.f32.mrf.mxu0
        %v1409 = vadd.f32 %v1168, %v1408
        %v1410 = vpop.f32.mrf.mxu0
        %1411 = vmatprep.mubr.bf16.mxu0 %v865
        %1412 = vmatmul.mubr.bf16.gmra.mxu0 %v864
        %v1413 = vpop.f32.mrf.mxu0
        %v1414 = vadd.f32 %v1173, %v1413
        %v1415 = vpop.f32.mrf.mxu0
        %v1416 = vpop.f32.mrf.mxu0
        %v1417 = vadd.f32 %v1176, %v1416
        %v1418 = vpop.f32.mrf.mxu0
        %1419 = vmatprep.mubr.bf16.mxu0 %v868
        %1420 = vmatmul.mubr.bf16.gmra.mxu0 %v867
        %v1421 = vpop.f32.mrf.mxu0
        %v1422 = vadd.f32 %v1181, %v1421
        %v1423 = vpop.f32.mrf.mxu0
        %v1424 = vpop.f32.mrf.mxu0
        %v1425 = vadd.f32 %v1184, %v1424
        %v1426 = vpop.f32.mrf.mxu0
        %1427 = vmatprep.mubr.bf16.mxu0 %v871
        %1428 = vmatmul.mubr.bf16.gmra.mxu0 %v870
        %v1429 = vpop.f32.mrf.mxu0
        %v1430 = vadd.f32 %v1189, %v1429
        %v1431 = vpop.f32.mrf.mxu0
        %v1432 = vpop.f32.mrf.mxu0
        %v1433 = vadd.f32 %v1192, %v1432
        %v1434 = vpop.f32.mrf.mxu0
        %1435 = vmatprep.mubr.bf16.mxu0 %v874
        %1436 = vmatmul.mubr.bf16.gmra.mxu0 %v873
        %v1437 = vpop.f32.mrf.mxu0
        %v1438 = vadd.f32 %v1197, %v1437
        %v1439 = vpop.f32.mrf.mxu0
        %v1440 = vpop.f32.mrf.mxu0
        %v1441 = vadd.f32 %v1200, %v1440
        %v1442 = vpop.f32.mrf.mxu0
        %1443 = vdwg.mxu0
        %1444 = vmatprep.subr.bf16.mxu0 0
        %1445 = vmatpush1.bf16.msra.mxu0 %v1338
        %1446 = vmatprep.subr.bf16.mxu0 0
        %1447 = vmatpush1.bf16.msra.mxu0 %v1337
        %1448 = vmatprep.subr.bf16.mxu0 0
        %1449 = vmatpush1.bf16.msra.mxu0 %v1336
        %1450 = vmatprep.subr.bf16.mxu0 0
        %1451 = vmatpush1.bf16.msra.mxu0 %v1335
        %1452 = vmatprep.subr.bf16.mxu0 0
        %1453 = vmatpush1.bf16.msra.mxu0 %v1334
        %1454 = vmatprep.subr.bf16.mxu0 0
        %1455 = vmatpush1.bf16.msra.mxu0 %v1333
        %1456 = vmatprep.subr.bf16.mxu0 0
        %1457 = vmatpush1.bf16.msra.mxu0 %v1332
        %1458 = vmatprep.subr.bf16.mxu0 0
        %1459 = vmatpush1.bf16.msra.mxu0 %v1331
        %1460 = vmatprep.subr.bf16.mxu0 0
        %1461 = vmatpush2.bf16.msra.mxu0 0
        %1462 = vmatprep.subr.bf16.mxu0 0
        %1463 = vmatpush2.bf16.msra.mxu0 0
        %1464 = vmatprep.subr.bf16.mxu0 0
        %1465 = vmatpush2.bf16.msra.mxu0 0
        %1466 = vmatprep.subr.bf16.mxu0 0
        %1467 = vmatpush2.bf16.msra.mxu0 0
        %1468 = vmatprep.subr.bf16.mxu0 0
        %1469 = vmatpush2.bf16.msra.mxu0 0
        %1470 = vmatprep.subr.bf16.mxu0 0
        %1471 = vmatpush2.bf16.msra.mxu0 0
        %1472 = vmatprep.subr.bf16.mxu0 0
        %1473 = vmatpush2.bf16.msra.mxu0 0
        %1474 = vmatprep.subr.bf16.mxu0 0
        %1475 = vmatpush2.bf16.msra.mxu0 0
        %1476 = vmatprep.mubr.bf16.mxu0 0
        %1477 = vmatmul.mubr.bf16.gmra.mxu0 %v1215
        %v1478 = vpop.f32.mrf.mxu0
        %v1479 = vadd.f32 %v1398, %v1478
        %v1480 = vpop.f32.mrf.mxu0
        %v1481 = vpop.f32.mrf.mxu0
        %v1482 = vadd.f32 %v1401, %v1481
        %v1483 = vpop.f32.mrf.mxu0
        %1484 = vmatprep.mubr.bf16.mxu0 0
        %1485 = vmatmul.mubr.bf16.gmra.mxu0 %v863
        %v1486 = vpop.f32.mrf.mxu0
        %v1487 = vadd.f32 %v1406, %v1486
        %v1488 = vpop.f32.mrf.mxu0
        %v1489 = vpop.f32.mrf.mxu0
        %v1490 = vadd.f32 %v1409, %v1489
        %v1491 = vpop.f32.mrf.mxu0
        %1492 = vmatprep.mubr.bf16.mxu0 0
        %1493 = vmatmul.mubr.bf16.gmra.mxu0 %v866
        %v1494 = vpop.f32.mrf.mxu0
        %v1495 = vadd.f32 %v1414, %v1494
        %v1496 = vpop.f32.mrf.mxu0
        %v1497 = vpop.f32.mrf.mxu0
        %v1498 = vadd.f32 %v1417, %v1497
        %v1499 = vpop.f32.mrf.mxu0
        %1500 = vmatprep.mubr.bf16.mxu0 0
        %1501 = vmatmul.mubr.bf16.gmra.mxu0 %v869
        %v1502 = vpop.f32.mrf.mxu0
        %v1503 = vadd.f32 %v1422, %v1502
        %v1504 = vpop.f32.mrf.mxu0
        %v1505 = vpop.f32.mrf.mxu0
        %v1506 = vadd.f32 %v1425, %v1505
        %v1507 = vpop.f32.mrf.mxu0
        %1508 = vmatprep.mubr.bf16.mxu0 0
        %1509 = vmatmul.mubr.bf16.gmra.mxu0 %v872
        %v1510 = vpop.f32.mrf.mxu0
        %v1511 = vadd.f32 %v1430, %v1510
        %v1512 = vpop.f32.mrf.mxu0
        %v1513 = vpop.f32.mrf.mxu0
        %v1514 = vadd.f32 %v1433, %v1513
        %v1515 = vpop.f32.mrf.mxu0
        %1516 = vmatprep.mubr.bf16.mxu0 0
        %1517 = vmatmul.mubr.bf16.gmra.mxu0 %v875
        %v1518 = vpop.f32.mrf.mxu0
        %v1519 = vadd.f32 %v1438, %v1518
        %v1520 = vpop.f32.mrf.mxu0
        %v1521 = vpop.f32.mrf.mxu0
        %v1522 = vadd.f32 %v1441, %v1521
        %v1523 = vpop.f32.mrf.mxu0
        %1524 = vdwg.mxu0
        %v1525 = vld [vmem:[#allocation3 + $0x30] sm:$0xff]
        %v1526 = vld [vmem:[#allocation3 + $0x38] sm:$0xf]
        %v1527 = vld [vmem:[#allocation3 + $0x3c] sm:$0xff]
        %v1528 = vld [vmem:[#allocation3 + $0x44] sm:$0xf]
        %v1529 = vld [vmem:[#allocation3 + $0x48] sm:$0xff]
        %v1530 = vld [vmem:[#allocation3 + $0x50] sm:$0xf]
        %v1531 = vld [vmem:[#allocation3 + $0x54] sm:$0xff]
        %v1532 = vld [vmem:[#allocation3 + $0x5c] sm:$0xf]
        %v1533 = vld [vmem:[#allocation3 + $0x60] sm:$0xff]
        %v1534 = vld [vmem:[#allocation3 + $0x68] sm:$0xf]
        %v1535 = vld [vmem:[#allocation3 + $0x6c] sm:$0xff]
        %v1536 = vld [vmem:[#allocation3 + $0x74] sm:$0xf]
        %v1537 = vld [vmem:[#allocation3 + $0x78] sm:$0xff]
        %v1538 = vld [vmem:[#allocation3 + $0x80] sm:$0xf]
        %v1539 = vld [vmem:[#allocation3 + $0x84] sm:$0xff]
        %v1540 = vld [vmem:[#allocation3 + $0x8c] sm:$0xf]
        %v1541 = vld [vmem:[#allocation3 + $0x90] sm:$0xff]
        %v1542 = vld [vmem:[#allocation3 + $0x98] sm:$0xf]
        %v1543 = vld [vmem:[#allocation3 + $0x9c] sm:$0xff]
        %v1544 = vld [vmem:[#allocation3 + $0xa4] sm:$0xf]
        %v1545 = vld [vmem:[#allocation3 + $0xa8] sm:$0xff]
        %v1546 = vld [vmem:[#allocation3 + $0xb0] sm:$0xf]
        %v1547 = vld [vmem:[#allocation3 + $0xb4] sm:$0xff]
        %v1548 = vld [vmem:[#allocation3 + $0xbc] sm:$0xf]
        %s1549 = scalar_lea.vmem %s1, 384
        %v1550 = vld [vmem:[%s1549] sm:$0xf]
        %v1551 = vld [vmem:[%s1549 + $0x4] sm:$0xf]
        %v1552 = vld [vmem:[%s1549 + $0x8] sm:$0xf]
        %v1553 = vld [vmem:[%s1549 + $0xc] sm:$0xf]
        %v1554 = vld [vmem:[%s1549 + $0x10] sm:$0xf]
        %v1555 = vld [vmem:[%s1549 + $0x14] sm:$0xf]
        %v1556 = vld [vmem:[%s1549 + $0x18] sm:$0xf]
        %v1557 = vld [vmem:[%s1549 + $0x1c] sm:$0xf]
        %v1558 = vld [vmem:[%s1549 + $0x20] sm:$0xf]
        %v1559 = vld [vmem:[%s1549 + $0x24] sm:$0xf]
        %v1560 = vld [vmem:[%s1549 + $0x28] sm:$0xf]
        %v1561 = vld [vmem:[%s1549 + $0x2c] sm:$0xf]
        %v1562 = vld [vmem:[%s1549 + $0x30] sm:$0xf]
        %v1563 = vld [vmem:[%s1549 + $0x34] sm:$0xf]
        %v1564 = vld [vmem:[%s1549 + $0x38] sm:$0xf]
        %v1565 = vld [vmem:[%s1549 + $0x3c] sm:$0xf]
        %v1566 = vld [vmem:[%s1549 + $0x40] sm:$0xf]
        %v1567 = vld [vmem:[%s1549 + $0x44] sm:$0xf]
        %v1568 = vld [vmem:[%s1549 + $0x48] sm:$0xf]
        %v1569 = vld [vmem:[%s1549 + $0x4c] sm:$0xf]
        %v1570 = vld [vmem:[%s1549 + $0x50] sm:$0xf]
        %v1571 = vld [vmem:[%s1549 + $0x54] sm:$0xf]
        %v1572 = vld [vmem:[%s1549 + $0x58] sm:$0xf]
        %v1573 = vld [vmem:[%s1549 + $0x5c] sm:$0xf]
        %v1574 = vld [vmem:[%s1549 + $0x60] sm:$0xf]
        %v1575 = vld [vmem:[%s1549 + $0x64] sm:$0xf]
        %v1576 = vld [vmem:[%s1549 + $0x68] sm:$0xf]
        %v1577 = vld [vmem:[%s1549 + $0x6c] sm:$0xf]
        %v1578 = vld [vmem:[%s1549 + $0x70] sm:$0xf]
        %v1579 = vld [vmem:[%s1549 + $0x74] sm:$0xf]
        %v1580 = vld [vmem:[%s1549 + $0x78] sm:$0xf]
        %v1581 = vld [vmem:[%s1549 + $0x7c] sm:$0xf]
        %v1582 = vld [vmem:[%s1549 + $0x80] sm:$0xf]
        %v1583 = vld [vmem:[%s1549 + $0x84] sm:$0xf]
        %v1584 = vld [vmem:[%s1549 + $0x88] sm:$0xf]
        %v1585 = vld [vmem:[%s1549 + $0x8c] sm:$0xf]
        %v1586 = vld [vmem:[%s1549 + $0x90] sm:$0xf]
        %v1587 = vld [vmem:[%s1549 + $0x94] sm:$0xf]
        %v1588 = vld [vmem:[%s1549 + $0x98] sm:$0xf]
        %v1589 = vld [vmem:[%s1549 + $0x9c] sm:$0xf]
        %v1590 = vld [vmem:[%s1549 + $0xa0] sm:$0xf]
        %v1591 = vld [vmem:[%s1549 + $0xa4] sm:$0xf]
        %v1592 = vld [vmem:[%s1549 + $0xa8] sm:$0xf]
        %v1593 = vld [vmem:[%s1549 + $0xac] sm:$0xf]
        %v1594 = vld [vmem:[%s1549 + $0xb0] sm:$0xf]
        %v1595 = vld [vmem:[%s1549 + $0xb4] sm:$0xf]
        %v1596 = vld [vmem:[%s1549 + $0xb8] sm:$0xf]
        %v1597 = vld [vmem:[%s1549 + $0xbc] sm:$0xf]
        %v1622 = vunpack.c.l.b16 %v1525
        %v1623 = vunpack.c.h.b16 %v1525
        %v1624 = vunpack.c.l.b16 %v1526
        %v1625 = vunpack.c.l.b16 %v1527
        %v1626 = vunpack.c.h.b16 %v1527
        %v1627 = vunpack.c.l.b16 %v1528
        %v1628 = vunpack.c.l.b16 %v1529
        %v1629 = vunpack.c.h.b16 %v1529
        %v1630 = vunpack.c.l.b16 %v1530
        %v1631 = vunpack.c.l.b16 %v1531
        %v1632 = vunpack.c.h.b16 %v1531
        %v1633 = vunpack.c.l.b16 %v1532
        %v1634 = vunpack.c.l.b16 %v1533
        %v1635 = vunpack.c.h.b16 %v1533
        %v1636 = vunpack.c.l.b16 %v1534
        %v1637 = vunpack.c.l.b16 %v1535
        %v1638 = vunpack.c.h.b16 %v1535
        %v1639 = vunpack.c.l.b16 %v1536
        %v1640 = vunpack.c.l.b16 %v1537
        %v1641 = vunpack.c.h.b16 %v1537
        %v1642 = vunpack.c.l.b16 %v1538
        %v1643 = vunpack.c.l.b16 %v1539
        %v1644 = vunpack.c.h.b16 %v1539
        %v1645 = vunpack.c.l.b16 %v1540
        %v1646 = vunpack.c.l.b16 %v1541
        %v1647 = vunpack.c.h.b16 %v1541
        %v1648 = vunpack.c.l.b16 %v1542
        %v1649 = vunpack.c.l.b16 %v1543
        %v1650 = vunpack.c.h.b16 %v1543
        %v1651 = vunpack.c.l.b16 %v1544
        %v1652 = vunpack.c.l.b16 %v1545
        %v1653 = vunpack.c.h.b16 %v1545
        %v1654 = vunpack.c.l.b16 %v1546
        %v1655 = vunpack.c.l.b16 %v1547
        %v1656 = vunpack.c.h.b16 %v1547
        %v1657 = vunpack.c.l.b16 %v1548
        %v1658 = vpack.c.b16 %v1625, %v1622
        %v1659 = vpack.c.b16 %v1626, %v1623
        %v1660 = vpack.c.b16 %v1627, %v1624
        %v1661 = vpack.c.b16 %v1631, %v1628
        %v1662 = vpack.c.b16 %v1632, %v1629
        %v1663 = vpack.c.b16 %v1633, %v1630
        %v1664 = vpack.c.b16 %v1637, %v1634
        %v1665 = vpack.c.b16 %v1638, %v1635
        %v1666 = vpack.c.b16 %v1639, %v1636
        %v1667 = vpack.c.b16 %v1643, %v1640
        %v1668 = vpack.c.b16 %v1644, %v1641
        %v1669 = vpack.c.b16 %v1645, %v1642
        %v1670 = vpack.c.b16 %v1649, %v1646
        %v1671 = vpack.c.b16 %v1650, %v1647
        %v1672 = vpack.c.b16 %v1651, %v1648
        %v1673 = vpack.c.b16 %v1655, %v1652
        %v1674 = vpack.c.b16 %v1656, %v1653
        %v1675 = vpack.c.b16 %v1657, %v1654
        %v1742 = vunpack.c.l.b16 %v1550
        %v1743 = vunpack.c.l.b16 %v1551
        %v1744 = vunpack.c.l.b16 %v1552
        %v1745 = vunpack.c.l.b16 %v1553
        %v1746 = vunpack.c.l.b16 %v1554
        %v1747 = vunpack.c.l.b16 %v1555
        %v1748 = vunpack.c.l.b16 %v1556
        %v1749 = vunpack.c.l.b16 %v1557
        %v1750 = vunpack.c.l.b16 %v1558
        %v1751 = vunpack.c.l.b16 %v1559
        %v1752 = vunpack.c.l.b16 %v1560
        %v1753 = vunpack.c.l.b16 %v1561
        %v1754 = vunpack.c.l.b16 %v1562
        %v1755 = vunpack.c.l.b16 %v1563
        %v1756 = vunpack.c.l.b16 %v1564
        %v1757 = vunpack.c.l.b16 %v1565
        %v1758 = vunpack.c.l.b16 %v1566
        %v1759 = vunpack.c.l.b16 %v1567
        %v1760 = vunpack.c.l.b16 %v1568
        %v1761 = vunpack.c.l.b16 %v1569
        %v1762 = vunpack.c.l.b16 %v1570
        %v1763 = vunpack.c.l.b16 %v1571
        %v1764 = vunpack.c.l.b16 %v1572
        %v1765 = vunpack.c.l.b16 %v1573
        %v1766 = vunpack.c.l.b16 %v1574
        %v1767 = vunpack.c.l.b16 %v1575
        %v1768 = vunpack.c.l.b16 %v1576
        %v1769 = vunpack.c.l.b16 %v1577
        %v1770 = vunpack.c.l.b16 %v1578
        %v1771 = vunpack.c.l.b16 %v1579
        %v1772 = vunpack.c.l.b16 %v1580
        %v1773 = vunpack.c.l.b16 %v1581
        %v1774 = vunpack.c.l.b16 %v1582
        %v1775 = vunpack.c.l.b16 %v1583
        %v1776 = vunpack.c.l.b16 %v1584
        %v1777 = vunpack.c.l.b16 %v1585
        %v1778 = vunpack.c.l.b16 %v1586
        %v1779 = vunpack.c.l.b16 %v1587
        %v1780 = vunpack.c.l.b16 %v1588
        %v1781 = vunpack.c.l.b16 %v1589
        %v1782 = vunpack.c.l.b16 %v1590
        %v1783 = vunpack.c.l.b16 %v1591
        %v1784 = vunpack.c.l.b16 %v1592
        %v1785 = vunpack.c.l.b16 %v1593
        %v1786 = vunpack.c.l.b16 %v1594
        %v1787 = vunpack.c.l.b16 %v1595
        %v1788 = vunpack.c.l.b16 %v1596
        %v1789 = vunpack.c.l.b16 %v1597
        %v1790 = vpack.c.b16 %v1743, %v1742
        %v1791 = vpack.c.b16 %v1745, %v1744
        %v1792 = vpack.c.b16 %v1747, %v1746
        %v1793 = vpack.c.b16 %v1749, %v1748
        %v1794 = vpack.c.b16 %v1751, %v1750
        %v1795 = vpack.c.b16 %v1753, %v1752
        %v1796 = vpack.c.b16 %v1755, %v1754
        %v1797 = vpack.c.b16 %v1757, %v1756
        %v1798 = vpack.c.b16 %v1759, %v1758
        %v1799 = vpack.c.b16 %v1761, %v1760
        %v1800 = vpack.c.b16 %v1763, %v1762
        %v1801 = vpack.c.b16 %v1765, %v1764
        %v1802 = vpack.c.b16 %v1767, %v1766
        %v1803 = vpack.c.b16 %v1769, %v1768
        %v1804 = vpack.c.b16 %v1771, %v1770
        %v1805 = vpack.c.b16 %v1773, %v1772
        %v1806 = vpack.c.b16 %v1775, %v1774
        %v1807 = vpack.c.b16 %v1777, %v1776
        %v1808 = vpack.c.b16 %v1779, %v1778
        %v1809 = vpack.c.b16 %v1781, %v1780
        %v1810 = vpack.c.b16 %v1783, %v1782
        %v1811 = vpack.c.b16 %v1785, %v1784
        %v1812 = vpack.c.b16 %v1787, %v1786
        %v1813 = vpack.c.b16 %v1789, %v1788
        %1838 = vmatprep.subr.bf16.mxu0 0
        %1839 = vmatpush1.bf16.msra.mxu0 %v1797
        %1840 = vmatprep.subr.bf16.mxu0 0
        %1841 = vmatpush1.bf16.msra.mxu0 %v1796
        %1842 = vmatprep.subr.bf16.mxu0 0
        %1843 = vmatpush1.bf16.msra.mxu0 %v1795
        %1844 = vmatprep.subr.bf16.mxu0 0
        %1845 = vmatpush1.bf16.msra.mxu0 %v1794
        %1846 = vmatprep.subr.bf16.mxu0 0
        %1847 = vmatpush1.bf16.msra.mxu0 %v1793
        %1848 = vmatprep.subr.bf16.mxu0 0
        %1849 = vmatpush1.bf16.msra.mxu0 %v1792
        %1850 = vmatprep.subr.bf16.mxu0 0
        %1851 = vmatpush1.bf16.msra.mxu0 %v1791
        %1852 = vmatprep.subr.bf16.mxu0 0
        %1853 = vmatpush1.bf16.msra.mxu0 %v1790
        %1854 = vmatprep.subr.bf16.mxu0 0
        %1855 = vmatpush2.bf16.msra.mxu0 %v1805
        %1856 = vmatprep.subr.bf16.mxu0 0
        %1857 = vmatpush2.bf16.msra.mxu0 %v1804
        %1858 = vmatprep.subr.bf16.mxu0 0
        %1859 = vmatpush2.bf16.msra.mxu0 %v1803
        %1860 = vmatprep.subr.bf16.mxu0 0
        %1861 = vmatpush2.bf16.msra.mxu0 %v1802
        %1862 = vmatprep.subr.bf16.mxu0 0
        %1863 = vmatpush2.bf16.msra.mxu0 %v1801
        %1864 = vmatprep.subr.bf16.mxu0 0
        %1865 = vmatpush2.bf16.msra.mxu0 %v1800
        %1866 = vmatprep.subr.bf16.mxu0 0
        %1867 = vmatpush2.bf16.msra.mxu0 %v1799
        %1868 = vmatprep.subr.bf16.mxu0 0
        %1869 = vmatpush2.bf16.msra.mxu0 %v1798
        %1870 = vmatprep.mubr.bf16.mxu0 %v1659
        %1871 = vmatmul.mubr.bf16.gmra.mxu0 %v1658
        %v1872 = vpop.f32.mrf.mxu0
        %v1873 = vadd.f32 0.0, %v1872
        %v1874 = vpop.f32.mrf.mxu0
        %v1875 = vpop.f32.mrf.mxu0
        %v1876 = vadd.f32 0.0, %v1875
        %v1877 = vpop.f32.mrf.mxu0
        %1878 = vmatprep.mubr.bf16.mxu0 %v1662
        %1879 = vmatmul.mubr.bf16.gmra.mxu0 %v1661
        %v1880 = vpop.f32.mrf.mxu0
        %v1881 = vadd.f32 0.0, %v1880
        %v1882 = vpop.f32.mrf.mxu0
        %v1883 = vpop.f32.mrf.mxu0
        %v1884 = vadd.f32 0.0, %v1883
        %v1885 = vpop.f32.mrf.mxu0
        %1886 = vmatprep.mubr.bf16.mxu0 %v1665
        %1887 = vmatmul.mubr.bf16.gmra.mxu0 %v1664
        %v1888 = vpop.f32.mrf.mxu0
        %v1889 = vadd.f32 0.0, %v1888
        %v1890 = vpop.f32.mrf.mxu0
        %v1891 = vpop.f32.mrf.mxu0
        %v1892 = vadd.f32 0.0, %v1891
        %v1893 = vpop.f32.mrf.mxu0
        %1894 = vmatprep.mubr.bf16.mxu0 %v1668
        %1895 = vmatmul.mubr.bf16.gmra.mxu0 %v1667
        %v1896 = vpop.f32.mrf.mxu0
        %v1897 = vadd.f32 0.0, %v1896
        %v1898 = vpop.f32.mrf.mxu0
        %v1899 = vpop.f32.mrf.mxu0
        %v1900 = vadd.f32 0.0, %v1899
        %v1901 = vpop.f32.mrf.mxu0
        %1902 = vmatprep.mubr.bf16.mxu0 %v1671
        %1903 = vmatmul.mubr.bf16.gmra.mxu0 %v1670
        %v1904 = vpop.f32.mrf.mxu0
        %v1905 = vadd.f32 0.0, %v1904
        %v1906 = vpop.f32.mrf.mxu0
        %v1907 = vpop.f32.mrf.mxu0
        %v1908 = vadd.f32 0.0, %v1907
        %v1909 = vpop.f32.mrf.mxu0
        %1910 = vmatprep.mubr.bf16.mxu0 %v1674
        %1911 = vmatmul.mubr.bf16.gmra.mxu0 %v1673
        %v1912 = vpop.f32.mrf.mxu0
        %v1913 = vadd.f32 0.0, %v1912
        %v1914 = vpop.f32.mrf.mxu0
        %v1915 = vpop.f32.mrf.mxu0
        %v1916 = vadd.f32 0.0, %v1915
        %v1917 = vpop.f32.mrf.mxu0
        %1918 = vdwg.mxu0
        %1919 = vmatprep.subr.bf16.mxu0 0
        %1920 = vmatpush1.bf16.msra.mxu0 %v1813
        %1921 = vmatprep.subr.bf16.mxu0 0
        %1922 = vmatpush1.bf16.msra.mxu0 %v1812
        %1923 = vmatprep.subr.bf16.mxu0 0
        %1924 = vmatpush1.bf16.msra.mxu0 %v1811
        %1925 = vmatprep.subr.bf16.mxu0 0
        %1926 = vmatpush1.bf16.msra.mxu0 %v1810
        %1927 = vmatprep.subr.bf16.mxu0 0
        %1928 = vmatpush1.bf16.msra.mxu0 %v1809
        %1929 = vmatprep.subr.bf16.mxu0 0
        %1930 = vmatpush1.bf16.msra.mxu0 %v1808
        %1931 = vmatprep.subr.bf16.mxu0 0
        %1932 = vmatpush1.bf16.msra.mxu0 %v1807
        %1933 = vmatprep.subr.bf16.mxu0 0
        %1934 = vmatpush1.bf16.msra.mxu0 %v1806
        %1935 = vmatprep.subr.bf16.mxu0 0
        %1936 = vmatpush2.bf16.msra.mxu0 0
        %1937 = vmatprep.subr.bf16.mxu0 0
        %1938 = vmatpush2.bf16.msra.mxu0 0
        %1939 = vmatprep.subr.bf16.mxu0 0
        %1940 = vmatpush2.bf16.msra.mxu0 0
        %1941 = vmatprep.subr.bf16.mxu0 0
        %1942 = vmatpush2.bf16.msra.mxu0 0
        %1943 = vmatprep.subr.bf16.mxu0 0
        %1944 = vmatpush2.bf16.msra.mxu0 0
        %1945 = vmatprep.subr.bf16.mxu0 0
        %1946 = vmatpush2.bf16.msra.mxu0 0
        %1947 = vmatprep.subr.bf16.mxu0 0
        %1948 = vmatpush2.bf16.msra.mxu0 0
        %1949 = vmatprep.subr.bf16.mxu0 0
        %1950 = vmatpush2.bf16.msra.mxu0 0
        %1951 = vmatprep.mubr.bf16.mxu0 0
        %1952 = vmatmul.mubr.bf16.gmra.mxu0 %v1660
        %v1953 = vpop.f32.mrf.mxu0
        %v1954 = vadd.f32 %v1873, %v1953
        %v1955 = vpop.f32.mrf.mxu0
        %v1956 = vpop.f32.mrf.mxu0
        %v1957 = vadd.f32 %v1876, %v1956
        %v1958 = vpop.f32.mrf.mxu0
        %1959 = vmatprep.mubr.bf16.mxu0 0
        %1960 = vmatmul.mubr.bf16.gmra.mxu0 %v1663
        %v1961 = vpop.f32.mrf.mxu0
        %v1962 = vadd.f32 %v1881, %v1961
        %v1963 = vpop.f32.mrf.mxu0
        %v1964 = vpop.f32.mrf.mxu0
        %v1965 = vadd.f32 %v1884, %v1964
        %v1966 = vpop.f32.mrf.mxu0
        %1967 = vmatprep.mubr.bf16.mxu0 0
        %1968 = vmatmul.mubr.bf16.gmra.mxu0 %v1666
        %v1969 = vpop.f32.mrf.mxu0
        %v1970 = vadd.f32 %v1889, %v1969
        %v1971 = vpop.f32.mrf.mxu0
        %v1972 = vpop.f32.mrf.mxu0
        %v1973 = vadd.f32 %v1892, %v1972
        %v1974 = vpop.f32.mrf.mxu0
        %1975 = vmatprep.mubr.bf16.mxu0 0
        %1976 = vmatmul.mubr.bf16.gmra.mxu0 %v1669
        %v1977 = vpop.f32.mrf.mxu0
        %v1978 = vadd.f32 %v1897, %v1977
        %v1979 = vpop.f32.mrf.mxu0
        %v1980 = vpop.f32.mrf.mxu0
        %v1981 = vadd.f32 %v1900, %v1980
        %v1982 = vpop.f32.mrf.mxu0
        %1983 = vmatprep.mubr.bf16.mxu0 0
        %1984 = vmatmul.mubr.bf16.gmra.mxu0 %v1672
        %v1985 = vpop.f32.mrf.mxu0
        %v1986 = vadd.f32 %v1905, %v1985
        %v1987 = vpop.f32.mrf.mxu0
        %v1988 = vpop.f32.mrf.mxu0
        %v1989 = vadd.f32 %v1908, %v1988
        %v1990 = vpop.f32.mrf.mxu0
        %1991 = vmatprep.mubr.bf16.mxu0 0
        %1992 = vmatmul.mubr.bf16.gmra.mxu0 %v1675
        %v1993 = vpop.f32.mrf.mxu0
        %v1994 = vadd.f32 %v1913, %v1993
        %v1995 = vpop.f32.mrf.mxu0
        %v1996 = vpop.f32.mrf.mxu0
        %v1997 = vadd.f32 %v1916, %v1996
        %v1998 = vpop.f32.mrf.mxu0
        %1999 = vdwg.mxu0
        %v2000 = vadd.f32 %v1479, %v1954
        %v2001 = vadd.f32 %v1482, %v1957
        %v2002 = vadd.f32 %v1487, %v1962
        %v2003 = vadd.f32 %v1490, %v1965
        %v2004 = vadd.f32 %v1495, %v1970
        %v2005 = vadd.f32 %v1498, %v1973
        %v2006 = vadd.f32 %v1503, %v1978
        %v2007 = vadd.f32 %v1506, %v1981
        %v2008 = vadd.f32 %v1511, %v1986
        %v2009 = vadd.f32 %v1514, %v1989
        %v2010 = vadd.f32 %v1519, %v1994
        %v2011 = vadd.f32 %v1522, %v1997
        %v2012 = vld [vmem:[%s2] sm:$0x1]
        %v2014 = vlaneseq
        %v2015 = vshrl.u32 %v2014, 7
        %v2016 = vsub.s32 0, %v2015
        %v2017 = vrot.slane %v2012, %v2016
        %v2019 = vmul.f32 %v2000, %v2017
        %v2020 = vmul.f32 %v2001, %v2017
        %v2021 = vmul.f32 %v2002, %v2017
        %v2022 = vmul.f32 %v2003, %v2017
        %v2023 = vmul.f32 %v2004, %v2017
        %v2024 = vmul.f32 %v2005, %v2017
        %v2025 = vmul.f32 %v2006, %v2017
        %v2026 = vmul.f32 %v2007, %v2017
        %v2027 = vmul.f32 %v2008, %v2017
        %v2028 = vmul.f32 %v2009, %v2017
        %v2029 = vmul.f32 %v2010, %v2017
        %v2030 = vmul.f32 %v2011, %v2017
        %v2031 = vld [vmem:[%s3] sm:$0x1]
        %v2033 = vlaneseq
        %v2034 = vshrl.u32 %v2033, 7
        %v2035 = vsub.s32 0, %v2034
        %v2036 = vrot.slane %v2031, %v2035
        %v2038 = vadd.f32 %v2019, %v2036
        %v2039 = vadd.f32 %v2020, %v2036
        %v2040 = vadd.f32 %v2021, %v2036
        %v2041 = vadd.f32 %v2022, %v2036
        %v2042 = vadd.f32 %v2023, %v2036
        %v2043 = vadd.f32 %v2024, %v2036
        %v2044 = vadd.f32 %v2025, %v2036
        %v2045 = vadd.f32 %v2026, %v2036
        %v2046 = vadd.f32 %v2027, %v2036
        %v2047 = vadd.f32 %v2028, %v2036
        %v2048 = vadd.f32 %v2029, %v2036
        %v2049 = vadd.f32 %v2030, %v2036
        %v2050 = vmax.f32 %v2038, 0.0
        %v2051 = vmax.f32 %v2039, 0.0
        %v2052 = vmax.f32 %v2040, 0.0
        %v2053 = vmax.f32 %v2041, 0.0
        %v2054 = vmax.f32 %v2042, 0.0
        %v2055 = vmax.f32 %v2043, 0.0
        %v2056 = vmax.f32 %v2044, 0.0
        %v2057 = vmax.f32 %v2045, 0.0
        %v2058 = vmax.f32 %v2046, 0.0
        %v2059 = vmax.f32 %v2047, 0.0
        %v2060 = vmax.f32 %v2048, 0.0
        %v2061 = vmax.f32 %v2049, 0.0
        %v2062 = vpack.c.bf16 %v2051, %v2050
        %v2063 = vpack.c.bf16 %v2053, %v2052
        %v2064 = vpack.c.bf16 %v2055, %v2054
        %v2065 = vpack.c.bf16 %v2057, %v2056
        %v2066 = vpack.c.bf16 %v2059, %v2058
        %v2067 = vpack.c.bf16 %v2061, %v2060
        %v2074 = vunpack.c.l.b16 %v2062
        %v2075 = vunpack.c.h.b16 %v2062
        %v2076 = vunpack.c.l.b16 %v2063
        %v2077 = vunpack.c.h.b16 %v2063
        %v2078 = vunpack.c.l.b16 %v2064
        %v2079 = vunpack.c.h.b16 %v2064
        %v2080 = vunpack.c.l.b16 %v2065
        %v2081 = vunpack.c.h.b16 %v2065
        %v2082 = vunpack.c.l.b16 %v2066
        %v2083 = vunpack.c.h.b16 %v2066
        %v2084 = vunpack.c.l.b16 %v2067
        %v2085 = vunpack.c.h.b16 %v2067
        %v2086 = vpack.c.b16 %v2074, %v2074
        %v2087 = vpack.c.b16 %v2075, %v2075
        %v2088 = vpack.c.b16 %v2076, %v2076
        %v2089 = vpack.c.b16 %v2077, %v2077
        %v2090 = vpack.c.b16 %v2078, %v2078
        %v2091 = vpack.c.b16 %v2079, %v2079
        %v2092 = vpack.c.b16 %v2080, %v2080
        %v2093 = vpack.c.b16 %v2081, %v2081
        %v2094 = vpack.c.b16 %v2082, %v2082
        %v2095 = vpack.c.b16 %v2083, %v2083
        %v2096 = vpack.c.b16 %v2084, %v2084
        %v2097 = vpack.c.b16 %v2085, %v2085
        %2110 = vst [vmem:[%s217] sm:$0xf] %v2086
        %2111 = vst [vmem:[%s217 + $0x4] sm:$0xf] %v2087
        %2112 = vst [vmem:[%s217 + $0x8] sm:$0xf] %v2088
        %2113 = vst [vmem:[%s217 + $0xc] sm:$0xf] %v2089
        %2114 = vst [vmem:[%s217 + $0x10] sm:$0xf] %v2090
        %2115 = vst [vmem:[%s217 + $0x14] sm:$0xf] %v2091
        %2116 = vst [vmem:[%s217 + $0x18] sm:$0xf] %v2092
        %2117 = vst [vmem:[%s217 + $0x1c] sm:$0xf] %v2093
        %2118 = vst [vmem:[%s217 + $0x20] sm:$0xf] %v2094
        %2119 = vst [vmem:[%s217 + $0x24] sm:$0xf] %v2095
        %2120 = vst [vmem:[%s217 + $0x28] sm:$0xf] %v2096
        %2121 = vst [vmem:[%s217 + $0x2c] sm:$0xf] %v2097
        %s2122 = sand.u32 %s131, 1
        %s2123 = scalar_lea.sflag [#allocation5], %s2122
        %s2124 = sand.u32 %s131, 1
        %s2125 = smul.addr %s2124, 48
        %s2126 = scalar_lea.vmem [#allocation4], %s2125
        // Predicated region
        $region41: #{tpu_custom_call.1} parent=35 // pred_check
          %p2127 = pneg %p141
        $region42: #{tpu_custom_call.1} parent=35 // pred_check_branch
          %2129 = sbr.rel (%p2127) target = $region44
        $region43: #{tpu_custom_call.1} parent=35 // pred_region
          %s2130 = smul.u32 6, %s23
          %s2132 = ssub.s32 768, 768
          %2133 = vsyncadd %s2123, %s2132
          %s2134 = smul.addr %s2130, 2
          %s2135 = smul.addr %s22, 36
          %s2136 = sadd.s32 %s2134, %s2135
          %s2137 = smul.addr %s2136, 64
          %s2138 = scalar_lea.hbm %s4, %s2137
          %s2139 = sshll.u32 %s2126, 4
          %s2140 = int_to_ptr.vmem [resolvable:$true] %s2139
          %2145 = dma.vmem_to_hbm [thread:$0]  %s2140, 768, %s2138, %s2123, 64, 64, 4
        $region44: #{tpu_custom_call.1} parent=35 // pred_fallthru
          _
      $region36: #{tpu_custom_call.1} parent=5 // pred_fallthru
        _
      %p2146 = scmp.le.s32.totalorder 2, %s13
      // Predicated region
      $region45: #{tpu_custom_call.1} parent=5 // pred_check
        %p2147 = pneg %p2146
      $region46: #{tpu_custom_call.1} parent=5 // pred_check_branch
        %2149 = sbr.rel (%p2147) target = $region48
      $region47: #{tpu_custom_call.1} parent=5 // pred_region
        %s2150 = ssub.s32 %s13, 2
        // Predicated region
        $region49: #{tpu_custom_call.1} parent=47 // pred_check
          %p2151 = pneg %p147
        $region50: #{tpu_custom_call.1} parent=47 // pred_check_branch
          %2153 = sbr.rel (%p2151) target = $region52
        $region51: #{tpu_custom_call.1} parent=47 // pred_region
          %s2154 = sand.u32 %s132, 1
          %s2155 = scalar_lea.sflag [#allocation5], %s2154
          %s2156 = sand.u32 %s132, 1
          %s2157 = smul.addr %s2156, 48
          %s2158 = scalar_lea.vmem [#allocation4], %s2157
          %2159 = dma.done %s2155, 768
        $region52: #{tpu_custom_call.1} parent=47 // pred_fallthru
          _
      $region48: #{tpu_custom_call.1} parent=5 // pred_fallthru
        _
    $region6: #{tpu_custom_call.1} parent=1 // loop_footer
      %s17 = sadd.s32 1, %s13
    $region7: #{tpu_custom_call.1} parent=1 // loop_footer_branch
      %12 = sbr.rel target = $region3
    $region8: #{tpu_custom_call.1} parent=1 // loop_exit
      _
    %2160 = vsyncpa [#allocation5], 1
    %s2161 = scalar_lea.sflag [#allocation5], 1
    %2162 = vsyncpa %s2161, 1

</llo_original>
